<compile_context>
chip_gen: v6e
topology: v6e:2x2x1
jax: 0.10.0
libtpu: 0.0.40
codegen_flags: <defaults>
</compile_context>

<pallas_src>
import functools

import jax
import jax.numpy as jnp
from jax.experimental import pallas as pl
from jax.experimental.pallas import tpu as pltpu


_EPS = 1e-6        # torch F.pairwise_distance default eps
_LANE = 128        # lane width
_SUBLANE = 16      # bf16 sublane packing (also satisfies the f32 requirement of 8)


def _round_up(n, m):
    return ((n + m - 1) // m) * m


def _dense(h, w_ref, b_ref, *, relu):
    """h @ W + b: MXU in W's dtype (bf16), f32 accumulate, f32 bias/ReLU epilogue."""
    acc = jnp.dot(h.astype(w_ref.dtype), w_ref[...],
                  preferred_element_type=jnp.float32)
    acc = acc + b_ref[...]
    return jnp.maximum(acc, 0.0) if relu else acc


def _row_l2_to_lanes(d, pad_corr):
    """Per-row L2 norm of d (tb, embed_p) -> (1, tb) with batch on the lane axis.

    One XLU transpose (free slot) so the store is a full-lane vst; padded embedding
    columns are exactly 0 so each contributes exactly eps^2 — subtract the constant
    instead of masking with iota/where every step.
    """
    dT = d.T                                               # (embed_p, tb)
    s = jnp.sum(dT * dT, axis=0, keepdims=True) - pad_corr  # (1, tb)
    return jnp.sqrt(jnp.maximum(s, 0.0))


def _triplet_kernel(x_ref, y_ref, z_ref,
                    aw1_ref, ab1_ref, aw2_ref, ab2_ref, aw3_ref, ab3_ref,
                    ew1_ref, eb1_ref, ew2_ref, eb2_ref, ew3_ref, eb3_ref,
                    dist_a_ref, dist_b_ref, ex_ref, ey_ref, ez_ref,
                    *, pad_corr):
    tb = x_ref.shape[0]

    # Attribute net on the anchor branch (3 layers, ReLU).
    # TODO(synk): my_net_3.py's exact embeddingnet_att is not in the spec; modeled as a
    # 3-layer ReLU MLP mapping input_size -> input_size.
    xa = _dense(x_ref[...], aw1_ref, ab1_ref, relu=True)
    xa = _dense(xa, aw2_ref, ab2_ref, relu=True)
    xa = _dense(xa, aw3_ref, ab3_ref, relu=True)

    # Shared embedding net: stack [anchor_att; pos; neg] in bf16 (no f32 round trip on
    # y/z) -> ONE MXU pass per layer for the whole triplet.
    h = jnp.concatenate([xa.astype(y_ref.dtype), y_ref[...], z_ref[...]], axis=0)
    h = _dense(h, ew1_ref, eb1_ref, relu=True)
    h = _dense(h, ew2_ref, eb2_ref, relu=True)
    # TODO(synk): no activation on the embedding head (standard for triplet embeddings);
    # flip to relu=True if my_net_3.py's embeddingnet ends in ReLU.
    emb = _dense(h, ew3_ref, eb3_ref, relu=False)

    ex = emb[0 * tb:1 * tb]
    ey = emb[1 * tb:2 * tb]
    ez = emb[2 * tb:3 * tb]
    ex_ref[...] = ex.astype(ex_ref.dtype)
    ey_ref[...] = ey.astype(ey_ref.dtype)
    ez_ref[...] = ez.astype(ez_ref.dtype)

    # F.pairwise_distance(a, b, 2) == ||a - b + eps||_2 per row, stored lane-dense (1, tb).
    dist_a_ref[...] = _row_l2_to_lanes(ex - ey + _EPS, pad_corr)
    dist_b_ref[...] = _row_l2_to_lanes(ex - ez + _EPS, pad_corr)


def triplet_network(x, y, z, att_params, emb_params, *,
                    batch_tile=None, mxu_dtype=jnp.bfloat16,
                    embed_out_dtype=jnp.float32):
    """TripletNetwork forward.

    x, y, z: [B, input_size] float32.
    att_params / emb_params: dicts w1,b1,w2,b2,w3,b3 with weights stored [in, out]
    (transposed vs nn.Linear) and biases [1, out]. The attribute net must map back to
    input_size so its output can feed the shared embedding net.
    Returns (dist_a [B], dist_b [B], embedded_x, embedded_y, embedded_z [B, embed]).
    """
    B, in_dim = x.shape
    assert y.shape == x.shape and z.shape == x.shape
    assert att_params["w3"].shape[1] == in_dim, \
        "attribute net output size must equal embedding-net input size"
    embed_dim = emb_params["w3"].shape[1]

    # ---- batch tiling -----------------------------------------------------------------
    # Single fat step when the whole batch fits one tile (no per-step overhead on the
    # single-TC v5e/v6e); otherwise 512-row tiles.  On v7x, pass batch_tile=B_pad//2
    # (a multiple of 128) to get an even grid so both TensorCores do equal work.
    if batch_tile is None:
        b16 = _round_up(B, _SUBLANE)
        batch_tile = b16 if b16 <= 1024 else 512
    tb = batch_tile
    assert tb % _SUBLANE == 0, "batch_tile must be a multiple of 16 (bf16 sublane pack)"
    B_pad = _round_up(B, tb)          # ragged batches are zero-padded, not rejected
    grid = (B_pad // tb,)
    if grid[0] > 1:
        assert tb % _LANE == 0, \
            "multi-step batch tiles must be a multiple of 128 (lane-dense dist blocks)"

    # ---- feature padding ----------------------------------------------------------------
    # Hidden/embed dims -> multiples of 128 (lane-dense MXU tiles & unmasked stores).
    # Input dim only -> multiple of 16: the full-dim block is legal and avoids the 4x HBM
    # read amplification on x/y/z when input_size is small.
    in_p = _round_up(in_dim, _SUBLANE)
    embed_p = _round_up(embed_dim, _LANE)
    pad_corr = float((embed_p - embed_dim) * (_EPS * _EPS))

    def pad_mat(a, rows, cols, dtype):
        a = jnp.pad(a, ((0, rows - a.shape[0]), (0, cols - a.shape[1])))
        return a.astype(dtype)

    def pad_net(p, in_rows, out_cols):
        h1_p = _round_up(p["w1"].shape[1], _LANE)
        h2_p = _round_up(p["w2"].shape[1], _LANE)
        return (
            pad_mat(p["w1"], in_rows, h1_p, mxu_dtype), pad_mat(p["b1"], 1, h1_p, jnp.float32),
            pad_mat(p["w2"], h1_p, h2_p, mxu_dtype),    pad_mat(p["b2"], 1, h2_p, jnp.float32),
            pad_mat(p["w3"], h2_p, out_cols, mxu_dtype), pad_mat(p["b3"], 1, out_cols, jnp.float32),
        )

    att_p = pad_net(att_params, in_p, in_p)
    emb_p = pad_net(emb_params, in_p, embed_p)

    def pad_act(a):
        return jnp.pad(a, ((0, B_pad - B), (0, in_p - in_dim))).astype(mxu_dtype)

    xp, yp, zp = pad_act(x), pad_act(y), pad_act(z)

    # ---- specs ------------------------------------------------------------------------
    act_spec = pl.BlockSpec((tb, in_p), lambda i: (i, 0))

    def full_spec(a):  # whole (small) weight/bias stays resident in VMEM every step
        return pl.BlockSpec(a.shape, lambda i: (0, 0))

    in_specs = [act_spec, act_spec, act_spec] + [full_spec(a) for a in (*att_p, *emb_p)]

    out_shape = (
        jax.ShapeDtypeStruct((1, B_pad), jnp.float32),            # dist_a (lane-dense)
        jax.ShapeDtypeStruct((1, B_pad), jnp.float32),            # dist_b (lane-dense)
        jax.ShapeDtypeStruct((B_pad, embed_p), embed_out_dtype),  # embedded_x
        jax.ShapeDtypeStruct((B_pad, embed_p), embed_out_dtype),  # embedded_y
        jax.ShapeDtypeStruct((B_pad, embed_p), embed_out_dtype),  # embedded_z
    )
    out_specs = [
        pl.BlockSpec((1, tb), lambda i: (0, i)),
        pl.BlockSpec((1, tb), lambda i: (0, i)),
        pl.BlockSpec((tb, embed_p), lambda i: (i, 0)),
        pl.BlockSpec((tb, embed_p), lambda i: (i, 0)),
        pl.BlockSpec((tb, embed_p), lambda i: (i, 0)),
    ]

    da, db, ex, ey, ez = pl.pallas_call(
        functools.partial(_triplet_kernel, pad_corr=pad_corr),
        out_shape=out_shape,
        grid_spec=pltpu.PrefetchScalarGridSpec(
            num_scalar_prefetch=0,
            grid=grid,
            in_specs=in_specs,
            out_specs=out_specs,
        ),
        compiler_params=pltpu.CompilerParams(
            dimension_semantics=("parallel",),  # shards batch tiles across v7x's 2 TCs
        ),
    )(xp, yp, zp, *att_p, *emb_p)

    return (da[0, :B], db[0, :B],
            ex[:B, :embed_dim], ey[:B, :embed_dim], ez[:B, :embed_dim])


# --------------------------- init + pure-JAX reference ----------------------------------

def init_mlp_params(key, in_dim, h1, h2, out_dim):
    """PyTorch nn.Linear default init; weights stored [in, out] (transposed)."""
    ks = jax.random.split(key, 6)

    def linear(kw, kb, fan_in, fan_out):
        bound = 1.0 / jnp.sqrt(jnp.float32(fan_in))
        w = jax.random.uniform(kw, (fan_in, fan_out), jnp.float32, -bound, bound)
        b = jax.random.uniform(kb, (1, fan_out), jnp.float32, -bound, bound)
        return w, b

    w1, b1 = linear(ks[0], ks[1], in_dim, h1)
    w2, b2 = linear(ks[2], ks[3], h1, h2)
    w3, b3 = linear(ks[4], ks[5], h2, out_dim)
    return {"w1": w1, "b1": b1, "w2": w2, "b2": b2, "w3": w3, "b3": b3}


def _dense_ref(h, w, b, relu, mxu_dtype):
    acc = jnp.dot(h.astype(mxu_dtype), w.astype(mxu_dtype),
                  preferred_element_type=jnp.float32) + b
    return jnp.maximum(acc, 0.0) if relu else acc


def reference_triplet(x, y, z, att_params, emb_params, mxu_dtype=jnp.bfloat16):
    ap, ep = att_params, emb_params
    xa = _dense_ref(x, ap["w1"], ap["b1"], True, mxu_dtype)
    xa = _dense_ref(xa, ap["w2"], ap["b2"], True, mxu_dtype)
    xa = _dense_ref(xa, ap["w3"], ap["b3"], True, mxu_dtype)

    def embed(h):
        h = _dense_ref(h, ep["w1"], ep["b1"], True, mxu_dtype)
        h = _dense_ref(h, ep["w2"], ep["b2"], True, mxu_dtype)
        return _dense_ref(h, ep["w3"], ep["b3"], False, mxu_dtype)

    ex, ey, ez = embed(xa), embed(y), embed(z)
    da = jnp.sqrt(jnp.sum(jnp.square(ex - ey + _EPS), axis=-1))
    db = jnp.sqrt(jnp.sum(jnp.square(ex - ez + _EPS), axis=-1))
    return da, db, ex, ey, ez


def _check(outs, refs, tag):
    names = ("dist_a", "dist_b", "embedded_x", "embedded_y", "embedded_z")
    for name, got, want in zip(names, outs, refs):
        assert got.shape == want.shape, (tag, name, got.shape, want.shape)
        err = float(jnp.max(jnp.abs(got - want)))
        assert err < 1e-4, f"[{tag}] {name} mismatch vs reference (max abs err {err})"


if __name__ == "__main__":
    key = jax.random.PRNGKey(0)
    kx, ky, kz, ka, ke = jax.random.split(key, 5)

    # Small shapes consistent with the module: triplet of [batch, input_size] vectors
    # through an attribute MLP (anchor only) and a shared embedding MLP.
    batch, input_size = 64, 32
    att_h1, att_h2 = 64, 48                  # attribute net: 32 -> 64 -> 48 -> 32
    emb_h1, emb_h2, embed_size = 64, 48, 16  # embedding net: 32 -> 64 -> 48 -> 16

    x = jax.random.normal(kx, (batch, input_size), jnp.float32)
    y = jax.random.normal(ky, (batch, input_size), jnp.float32)
    z = jax.random.normal(kz, (batch, input_size), jnp.float32)
    att_params = init_mlp_params(ka, input_size, att_h1, att_h2, input_size)
    emb_params = init_mlp_params(ke, input_size, emb_h1, emb_h2, embed_size)

    # Default heuristic: whole batch in a single fat grid step (no stepping overhead).
    outs = triplet_network(x, y, z, att_params, emb_params)
    outs = jax.block_until_ready(outs)
    _check(outs, reference_triplet(x, y, z, att_params, emb_params), "single-step")

    # Multi-step path (e.g. large batch / v7x even-grid): 256 rows, 128-row tiles -> 2
    # grid steps shared across the two v7x TensorCores.
    x2 = jnp.tile(x, (4, 1)); y2 = jnp.tile(y, (4, 1)); z2 = jnp.tile(z, (4, 1))
    outs2 = triplet_network(x2, y2, z2, att_params, emb_params, batch_tile=128)
    outs2 = jax.block_until_ready(outs2)
    _check(outs2, reference_triplet(x2, y2, z2, att_params, emb_params), "two-step")

    print("KERNEL_OK")
</pallas_src>

<mosaic_0001>
module attributes {stable_mosaic.version = 11 : i64} {
  func.func @_triplet_kernel(%arg0: i32, %arg1: memref<64x32xbf16, #tpu.memory_space<vmem>>, %arg2: memref<64x32xbf16, #tpu.memory_space<vmem>>, %arg3: memref<64x32xbf16, #tpu.memory_space<vmem>>, %arg4: memref<32x128xbf16, #tpu.memory_space<vmem>>, %arg5: memref<1x128xf32, #tpu.memory_space<vmem>>, %arg6: memref<128x128xbf16, #tpu.memory_space<vmem>>, %arg7: memref<1x128xf32, #tpu.memory_space<vmem>>, %arg8: memref<128x32xbf16, #tpu.memory_space<vmem>>, %arg9: memref<1x32xf32, #tpu.memory_space<vmem>>, %arg10: memref<32x128xbf16, #tpu.memory_space<vmem>>, %arg11: memref<1x128xf32, #tpu.memory_space<vmem>>, %arg12: memref<128x128xbf16, #tpu.memory_space<vmem>>, %arg13: memref<1x128xf32, #tpu.memory_space<vmem>>, %arg14: memref<128x128xbf16, #tpu.memory_space<vmem>>, %arg15: memref<1x128xf32, #tpu.memory_space<vmem>>, %arg16: memref<1x64xf32, #tpu.memory_space<vmem>>, %arg17: memref<1x64xf32, #tpu.memory_space<vmem>>, %arg18: memref<64x128xf32, #tpu.memory_space<vmem>>, %arg19: memref<64x128xf32, #tpu.memory_space<vmem>>, %arg20: memref<64x128xf32, #tpu.memory_space<vmem>>) attributes {dimension_semantics = [#tpu.dimension_semantics<parallel>], iteration_bounds = array<i64: 1>, scalar_prefetch = 0 : i64, scratch_operands = 0 : i64, tpu.core_type = #tpu.core_type<tc>, window_params = [{transform_indices = @transform_0, window_bounds = array<i64: 64, 32>}, {transform_indices = @transform_1, window_bounds = array<i64: 64, 32>}, {transform_indices = @transform_2, window_bounds = array<i64: 64, 32>}, {pipeline_mode = #tpu.pipeline_mode<synchronous>, transform_indices = @transform_3, window_bounds = array<i64: 32, 128>}, {pipeline_mode = #tpu.pipeline_mode<synchronous>, transform_indices = @transform_4, window_bounds = array<i64: 1, 128>}, {pipeline_mode = #tpu.pipeline_mode<synchronous>, transform_indices = @transform_5, window_bounds = array<i64: 128, 128>}, {pipeline_mode = #tpu.pipeline_mode<synchronous>, transform_indices = @transform_6, window_bounds = array<i64: 1, 128>}, {pipeline_mode = #tpu.pipeline_mode<synchronous>, transform_indices = @transform_7, window_bounds = array<i64: 128, 32>}, {pipeline_mode = #tpu.pipeline_mode<synchronous>, transform_indices = @transform_8, window_bounds = array<i64: 1, 32>}, {pipeline_mode = #tpu.pipeline_mode<synchronous>, transform_indices = @transform_9, window_bounds = array<i64: 32, 128>}, {pipeline_mode = #tpu.pipeline_mode<synchronous>, transform_indices = @transform_10, window_bounds = array<i64: 1, 128>}, {pipeline_mode = #tpu.pipeline_mode<synchronous>, transform_indices = @transform_11, window_bounds = array<i64: 128, 128>}, {pipeline_mode = #tpu.pipeline_mode<synchronous>, transform_indices = @transform_12, window_bounds = array<i64: 1, 128>}, {pipeline_mode = #tpu.pipeline_mode<synchronous>, transform_indices = @transform_13, window_bounds = array<i64: 128, 128>}, {pipeline_mode = #tpu.pipeline_mode<synchronous>, transform_indices = @transform_14, window_bounds = array<i64: 1, 128>}, {transform_indices = @transform_15, window_bounds = array<i64: 1, 64>}, {transform_indices = @transform_16, window_bounds = array<i64: 1, 64>}, {transform_indices = @transform_17, window_bounds = array<i64: 64, 128>}, {transform_indices = @transform_18, window_bounds = array<i64: 64, 128>}, {transform_indices = @transform_19, window_bounds = array<i64: 64, 128>}]} {
    %c0 = arith.constant 0 : index
    %c0_0 = arith.constant 0 : index
    %0 = vector.load %arg1[%c0, %c0_0] : memref<64x32xbf16, #tpu.memory_space<vmem>>, vector<64x32xbf16>
    %c0_1 = arith.constant 0 : index
    %c0_2 = arith.constant 0 : index
    %1 = vector.load %arg4[%c0_1, %c0_2] : memref<32x128xbf16, #tpu.memory_space<vmem>>, vector<32x128xbf16>
    %cst = arith.constant dense<0.000000e+00> : vector<64x128xf32>
    %2 = tpu.matmul %0, %1, %cst {dimension_numbers = #tpu.dot_dimension_numbers<[1], [0], [0], [1], [0, 0, 1, 1], [], []>} : vector<64x32xbf16>, vector<32x128xbf16>, vector<64x128xf32> -> vector<64x128xf32>
    %c0_3 = arith.constant 0 : index
    %c0_4 = arith.constant 0 : index
    %3 = vector.load %arg5[%c0_3, %c0_4] : memref<1x128xf32, #tpu.memory_space<vmem>>, vector<1x128xf32>
    %4 = vector.broadcast %3 : vector<1x128xf32> to vector<64x128xf32>
    %5 = arith.addf %2, %4 : vector<64x128xf32>
    %cst_5 = arith.constant 0.000000e+00 : f32
    %6 = vector.broadcast %cst_5 : f32 to vector<64x128xf32>
    %7 = arith.maximumf %5, %6 : vector<64x128xf32>
    %8 = arith.truncf %7 : vector<64x128xf32> to vector<64x128xbf16>
    %c0_6 = arith.constant 0 : index
    %c0_7 = arith.constant 0 : index
    %9 = vector.load %arg6[%c0_6, %c0_7] : memref<128x128xbf16, #tpu.memory_space<vmem>>, vector<128x128xbf16>
    %cst_8 = arith.constant dense<0.000000e+00> : vector<64x128xf32>
    %10 = tpu.matmul %8, %9, %cst_8 {dimension_numbers = #tpu.dot_dimension_numbers<[1], [0], [0], [1], [0, 0, 1, 1], [], []>} : vector<64x128xbf16>, vector<128x128xbf16>, vector<64x128xf32> -> vector<64x128xf32>
    %c0_9 = arith.constant 0 : index
    %c0_10 = arith.constant 0 : index
    %11 = vector.load %arg7[%c0_9, %c0_10] : memref<1x128xf32, #tpu.memory_space<vmem>>, vector<1x128xf32>
    %12 = vector.broadcast %11 : vector<1x128xf32> to vector<64x128xf32>
    %13 = arith.addf %10, %12 : vector<64x128xf32>
    %cst_11 = arith.constant 0.000000e+00 : f32
    %14 = vector.broadcast %cst_11 : f32 to vector<64x128xf32>
    %15 = arith.maximumf %13, %14 : vector<64x128xf32>
    %16 = arith.truncf %15 : vector<64x128xf32> to vector<64x128xbf16>
    %c0_12 = arith.constant 0 : index
    %c0_13 = arith.constant 0 : index
    %17 = vector.load %arg8[%c0_12, %c0_13] : memref<128x32xbf16, #tpu.memory_space<vmem>>, vector<128x32xbf16>
    %cst_14 = arith.constant dense<0.000000e+00> : vector<64x32xf32>
    %18 = tpu.matmul %16, %17, %cst_14 {dimension_numbers = #tpu.dot_dimension_numbers<[1], [0], [0], [1], [0, 0, 1, 1], [], []>} : vector<64x128xbf16>, vector<128x32xbf16>, vector<64x32xf32> -> vector<64x32xf32>
    %c0_15 = arith.constant 0 : index
    %c0_16 = arith.constant 0 : index
    %19 = vector.load %arg9[%c0_15, %c0_16] : memref<1x32xf32, #tpu.memory_space<vmem>>, vector<1x32xf32>
    %20 = vector.broadcast %19 : vector<1x32xf32> to vector<64x32xf32>
    %21 = arith.addf %18, %20 : vector<64x32xf32>
    %cst_17 = arith.constant 0.000000e+00 : f32
    %22 = vector.broadcast %cst_17 : f32 to vector<64x32xf32>
    %23 = arith.maximumf %21, %22 : vector<64x32xf32>
    %24 = arith.truncf %23 : vector<64x32xf32> to vector<64x32xbf16>
    %c0_18 = arith.constant 0 : index
    %c0_19 = arith.constant 0 : index
    %25 = vector.load %arg2[%c0_18, %c0_19] : memref<64x32xbf16, #tpu.memory_space<vmem>>, vector<64x32xbf16>
    %c0_20 = arith.constant 0 : index
    %c0_21 = arith.constant 0 : index
    %26 = vector.load %arg3[%c0_20, %c0_21] : memref<64x32xbf16, #tpu.memory_space<vmem>>, vector<64x32xbf16>
    %27 = tpu.concatenate %24, %25, %26 in 0 : vector<64x32xbf16>, vector<64x32xbf16>, vector<64x32xbf16> -> vector<192x32xbf16>
    %c0_22 = arith.constant 0 : index
    %c0_23 = arith.constant 0 : index
    %28 = vector.load %arg10[%c0_22, %c0_23] : memref<32x128xbf16, #tpu.memory_space<vmem>>, vector<32x128xbf16>
    %cst_24 = arith.constant dense<0.000000e+00> : vector<192x128xf32>
    %29 = tpu.matmul %27, %28, %cst_24 {dimension_numbers = #tpu.dot_dimension_numbers<[1], [0], [0], [1], [0, 0, 1, 1], [], []>} : vector<192x32xbf16>, vector<32x128xbf16>, vector<192x128xf32> -> vector<192x128xf32>
    %c0_25 = arith.constant 0 : index
    %c0_26 = arith.constant 0 : index
    %30 = vector.load %arg11[%c0_25, %c0_26] : memref<1x128xf32, #tpu.memory_space<vmem>>, vector<1x128xf32>
    %31 = vector.broadcast %30 : vector<1x128xf32> to vector<192x128xf32>
    %32 = arith.addf %29, %31 : vector<192x128xf32>
    %cst_27 = arith.constant 0.000000e+00 : f32
    %33 = vector.broadcast %cst_27 : f32 to vector<192x128xf32>
    %34 = arith.maximumf %32, %33 : vector<192x128xf32>
    %35 = arith.truncf %34 : vector<192x128xf32> to vector<192x128xbf16>
    %c0_28 = arith.constant 0 : index
    %c0_29 = arith.constant 0 : index
    %36 = vector.load %arg12[%c0_28, %c0_29] : memref<128x128xbf16, #tpu.memory_space<vmem>>, vector<128x128xbf16>
    %cst_30 = arith.constant dense<0.000000e+00> : vector<192x128xf32>
    %37 = tpu.matmul %35, %36, %cst_30 {dimension_numbers = #tpu.dot_dimension_numbers<[1], [0], [0], [1], [0, 0, 1, 1], [], []>} : vector<192x128xbf16>, vector<128x128xbf16>, vector<192x128xf32> -> vector<192x128xf32>
    %c0_31 = arith.constant 0 : index
    %c0_32 = arith.constant 0 : index
    %38 = vector.load %arg13[%c0_31, %c0_32] : memref<1x128xf32, #tpu.memory_space<vmem>>, vector<1x128xf32>
    %39 = vector.broadcast %38 : vector<1x128xf32> to vector<192x128xf32>
    %40 = arith.addf %37, %39 : vector<192x128xf32>
    %cst_33 = arith.constant 0.000000e+00 : f32
    %41 = vector.broadcast %cst_33 : f32 to vector<192x128xf32>
    %42 = arith.maximumf %40, %41 : vector<192x128xf32>
    %43 = arith.truncf %42 : vector<192x128xf32> to vector<192x128xbf16>
    %c0_34 = arith.constant 0 : index
    %c0_35 = arith.constant 0 : index
    %44 = vector.load %arg14[%c0_34, %c0_35] : memref<128x128xbf16, #tpu.memory_space<vmem>>, vector<128x128xbf16>
    %cst_36 = arith.constant dense<0.000000e+00> : vector<192x128xf32>
    %45 = tpu.matmul %43, %44, %cst_36 {dimension_numbers = #tpu.dot_dimension_numbers<[1], [0], [0], [1], [0, 0, 1, 1], [], []>} : vector<192x128xbf16>, vector<128x128xbf16>, vector<192x128xf32> -> vector<192x128xf32>
    %c0_37 = arith.constant 0 : index
    %c0_38 = arith.constant 0 : index
    %46 = vector.load %arg15[%c0_37, %c0_38] : memref<1x128xf32, #tpu.memory_space<vmem>>, vector<1x128xf32>
    %47 = vector.broadcast %46 : vector<1x128xf32> to vector<192x128xf32>
    %48 = arith.addf %45, %47 : vector<192x128xf32>
    %49 = vector.extract_strided_slice %48 {offsets = [0, 0], sizes = [64, 128], strides = [1, 1]} : vector<192x128xf32> to vector<64x128xf32>
    %50 = vector.extract_strided_slice %48 {offsets = [64, 0], sizes = [64, 128], strides = [1, 1]} : vector<192x128xf32> to vector<64x128xf32>
    %51 = vector.extract_strided_slice %48 {offsets = [128, 0], sizes = [64, 128], strides = [1, 1]} : vector<192x128xf32> to vector<64x128xf32>
    %c0_39 = arith.constant 0 : index
    %c0_40 = arith.constant 0 : index
    %52 = vector.load %arg18[%c0_39, %c0_40] : memref<64x128xf32, #tpu.memory_space<vmem>>, vector<64x128xf32>
    tpu.vector_store %arg18[%c0_39, %c0_40], %49 {strides = array<i32>} : memref<64x128xf32, #tpu.memory_space<vmem>>, vector<64x128xf32>,
    %c0_41 = arith.constant 0 : index
    %c0_42 = arith.constant 0 : index
    %53 = vector.load %arg19[%c0_41, %c0_42] : memref<64x128xf32, #tpu.memory_space<vmem>>, vector<64x128xf32>
    tpu.vector_store %arg19[%c0_41, %c0_42], %50 {strides = array<i32>} : memref<64x128xf32, #tpu.memory_space<vmem>>, vector<64x128xf32>,
    %c0_43 = arith.constant 0 : index
    %c0_44 = arith.constant 0 : index
    %54 = vector.load %arg20[%c0_43, %c0_44] : memref<64x128xf32, #tpu.memory_space<vmem>>, vector<64x128xf32>
    tpu.vector_store %arg20[%c0_43, %c0_44], %51 {strides = array<i32>} : memref<64x128xf32, #tpu.memory_space<vmem>>, vector<64x128xf32>,
    %55 = arith.subf %49, %50 : vector<64x128xf32>
    %cst_45 = arith.constant 9.99999997E-7 : f32
    %56 = vector.broadcast %cst_45 : f32 to vector<64x128xf32>
    %57 = arith.addf %55, %56 : vector<64x128xf32>
    %58 = tpu.transpose %57, [1, 0] : vector<64x128xf32> -> vector<128x64xf32>
    %59 = arith.mulf %58, %58 : vector<128x64xf32>
    %cst_46 = arith.constant dense<0.000000e+00> : vector<64xf32>
    %60 = vector.multi_reduction <add>, %59, %cst_46 [0] : vector<128x64xf32> to vector<64xf32>
    %61 = vector.shape_cast %60 : vector<64xf32> to vector<1x64xf32>
    %cst_47 = arith.constant 1.120000e-10 : f32
    %62 = vector.broadcast %cst_47 : f32 to vector<1x64xf32>
    %63 = arith.subf %61, %62 : vector<1x64xf32>
    %cst_48 = arith.constant 0.000000e+00 : f32
    %64 = vector.broadcast %cst_48 : f32 to vector<1x64xf32>
    %65 = arith.maximumf %63, %64 : vector<1x64xf32>
    %66 = math.sqrt %65 : vector<1x64xf32>
    %c0_49 = arith.constant 0 : index
    %c0_50 = arith.constant 0 : index
    %67 = vector.load %arg16[%c0_49, %c0_50] : memref<1x64xf32, #tpu.memory_space<vmem>>, vector<1x64xf32>
    tpu.vector_store %arg16[%c0_49, %c0_50], %66 {strides = array<i32>} : memref<1x64xf32, #tpu.memory_space<vmem>>, vector<1x64xf32>,
    %68 = arith.subf %49, %51 : vector<64x128xf32>
    %cst_51 = arith.constant 9.99999997E-7 : f32
    %69 = vector.broadcast %cst_51 : f32 to vector<64x128xf32>
    %70 = arith.addf %68, %69 : vector<64x128xf32>
    %71 = tpu.transpose %70, [1, 0] : vector<64x128xf32> -> vector<128x64xf32>
    %72 = arith.mulf %71, %71 : vector<128x64xf32>
    %cst_52 = arith.constant dense<0.000000e+00> : vector<64xf32>
    %73 = vector.multi_reduction <add>, %72, %cst_52 [0] : vector<128x64xf32> to vector<64xf32>
    %74 = vector.shape_cast %73 : vector<64xf32> to vector<1x64xf32>
    %cst_53 = arith.constant 1.120000e-10 : f32
    %75 = vector.broadcast %cst_53 : f32 to vector<1x64xf32>
    %76 = arith.subf %74, %75 : vector<1x64xf32>
    %cst_54 = arith.constant 0.000000e+00 : f32
    %77 = vector.broadcast %cst_54 : f32 to vector<1x64xf32>
    %78 = arith.maximumf %76, %77 : vector<1x64xf32>
    %79 = math.sqrt %78 : vector<1x64xf32>
    %c0_55 = arith.constant 0 : index
    %c0_56 = arith.constant 0 : index
    %80 = vector.load %arg17[%c0_55, %c0_56] : memref<1x64xf32, #tpu.memory_space<vmem>>, vector<1x64xf32>
    tpu.vector_store %arg17[%c0_55, %c0_56], %79 {strides = array<i32>} : memref<1x64xf32, #tpu.memory_space<vmem>>, vector<1x64xf32>,
    return
  }
  func.func @transform_0(%arg0: i32) -> (i32, i32) {
    %c0_i32 = arith.constant 0 : i32
    %c0_i32_0 = arith.constant 0 : i32
    return %arg0, %c0_i32 : i32, i32
  }
  func.func @transform_1(%arg0: i32) -> (i32, i32) {
    %c0_i32 = arith.constant 0 : i32
    %c0_i32_0 = arith.constant 0 : i32
    return %arg0, %c0_i32 : i32, i32
  }
  func.func @transform_2(%arg0: i32) -> (i32, i32) {
    %c0_i32 = arith.constant 0 : i32
    %c0_i32_0 = arith.constant 0 : i32
    return %arg0, %c0_i32 : i32, i32
  }
  func.func @transform_3(%arg0: i32) -> (i32, i32) {
    %c0_i32 = arith.constant 0 : i32
    %c0_i32_0 = arith.constant 0 : i32
    %c0_i32_1 = arith.constant 0 : i32
    return %c0_i32, %c0_i32_0 : i32, i32
  }
  func.func @transform_4(%arg0: i32) -> (i32, i32) {
    %c0_i32 = arith.constant 0 : i32
    %c0_i32_0 = arith.constant 0 : i32
    %c0_i32_1 = arith.constant 0 : i32
    return %c0_i32, %c0_i32_0 : i32, i32
  }
  func.func @transform_5(%arg0: i32) -> (i32, i32) {
    %c0_i32 = arith.constant 0 : i32
    %c0_i32_0 = arith.constant 0 : i32
    %c0_i32_1 = arith.constant 0 : i32
    return %c0_i32, %c0_i32_0 : i32, i32
  }
  func.func @transform_6(%arg0: i32) -> (i32, i32) {
    %c0_i32 = arith.constant 0 : i32
    %c0_i32_0 = arith.constant 0 : i32
    %c0_i32_1 = arith.constant 0 : i32
    return %c0_i32, %c0_i32_0 : i32, i32
  }
  func.func @transform_7(%arg0: i32) -> (i32, i32) {
    %c0_i32 = arith.constant 0 : i32
    %c0_i32_0 = arith.constant 0 : i32
    %c0_i32_1 = arith.constant 0 : i32
    return %c0_i32, %c0_i32_0 : i32, i32
  }
  func.func @transform_8(%arg0: i32) -> (i32, i32) {
    %c0_i32 = arith.constant 0 : i32
    %c0_i32_0 = arith.constant 0 : i32
    %c0_i32_1 = arith.constant 0 : i32
    return %c0_i32, %c0_i32_0 : i32, i32
  }
  func.func @transform_9(%arg0: i32) -> (i32, i32) {
    %c0_i32 = arith.constant 0 : i32
    %c0_i32_0 = arith.constant 0 : i32
    %c0_i32_1 = arith.constant 0 : i32
    return %c0_i32, %c0_i32_0 : i32, i32
  }
  func.func @transform_10(%arg0: i32) -> (i32, i32) {
    %c0_i32 = arith.constant 0 : i32
    %c0_i32_0 = arith.constant 0 : i32
    %c0_i32_1 = arith.constant 0 : i32
    return %c0_i32, %c0_i32_0 : i32, i32
  }
  func.func @transform_11(%arg0: i32) -> (i32, i32) {
    %c0_i32 = arith.constant 0 : i32
    %c0_i32_0 = arith.constant 0 : i32
    %c0_i32_1 = arith.constant 0 : i32
    return %c0_i32, %c0_i32_0 : i32, i32
  }
  func.func @transform_12(%arg0: i32) -> (i32, i32) {
    %c0_i32 = arith.constant 0 : i32
    %c0_i32_0 = arith.constant 0 : i32
    %c0_i32_1 = arith.constant 0 : i32
    return %c0_i32, %c0_i32_0 : i32, i32
  }
  func.func @transform_13(%arg0: i32) -> (i32, i32) {
    %c0_i32 = arith.constant 0 : i32
    %c0_i32_0 = arith.constant 0 : i32
    %c0_i32_1 = arith.constant 0 : i32
    return %c0_i32, %c0_i32_0 : i32, i32
  }
  func.func @transform_14(%arg0: i32) -> (i32, i32) {
    %c0_i32 = arith.constant 0 : i32
    %c0_i32_0 = arith.constant 0 : i32
    %c0_i32_1 = arith.constant 0 : i32
    return %c0_i32, %c0_i32_0 : i32, i32
  }
  func.func @transform_15(%arg0: i32) -> (i32, i32) {
    %c0_i32 = arith.constant 0 : i32
    %c0_i32_0 = arith.constant 0 : i32
    return %c0_i32, %arg0 : i32, i32
  }
  func.func @transform_16(%arg0: i32) -> (i32, i32) {
    %c0_i32 = arith.constant 0 : i32
    %c0_i32_0 = arith.constant 0 : i32
    return %c0_i32, %arg0 : i32, i32
  }
  func.func @transform_17(%arg0: i32) -> (i32, i32) {
    %c0_i32 = arith.constant 0 : i32
    %c0_i32_0 = arith.constant 0 : i32
    return %arg0, %c0_i32 : i32, i32
  }
  func.func @transform_18(%arg0: i32) -> (i32, i32) {
    %c0_i32 = arith.constant 0 : i32
    %c0_i32_0 = arith.constant 0 : i32
    return %arg0, %c0_i32 : i32, i32
  }
  func.func @transform_19(%arg0: i32) -> (i32, i32) {
    %c0_i32 = arith.constant 0 : i32
    %c0_i32_0 = arith.constant 0 : i32
    return %arg0, %c0_i32 : i32, i32
  }
}

</mosaic_0001>

<llo_original>
// kernel: tpu_custom_call.1
$region0: #{tpu_custom_call.1}
  #allocation0 [shape = 'u32[]', space=smem, size = 0x4, offset = 0x4, fixed_abs, tag = 'smem constant byte address 0x4 - core index']
  #allocation1 [shape = 'u32[144,128]{1,0:T(1,128)}', space=vmem, size = 0x12000, scoped, tag = 'internal scratch']
  %s0 = inlined_call_operand.vmem [shape: bf16[64,32], index: 0, kind: input, shape index: {}]
  %s1 = inlined_call_operand.vmem [shape: bf16[64,32], index: 1, kind: input, shape index: {}]
  %s2 = inlined_call_operand.vmem [shape: bf16[64,32], index: 2, kind: input, shape index: {}]
  %s3 = inlined_call_operand.hbm [shape: bf16[32,128], index: 3, kind: input, shape index: {}]
  %s4 = inlined_call_operand.vmem [shape: f32[1,128], index: 4, kind: input, shape index: {}]
  %s5 = inlined_call_operand.vmem [shape: bf16[128,128], index: 5, kind: input, shape index: {}]
  %s6 = inlined_call_operand.vmem [shape: f32[1,128], index: 6, kind: input, shape index: {}]
  %s7 = inlined_call_operand.vmem [shape: bf16[128,32], index: 7, kind: input, shape index: {}]
  %s8 = inlined_call_operand.vmem [shape: f32[1,32], index: 8, kind: input, shape index: {}]
  %s9 = inlined_call_operand.hbm [shape: bf16[32,128], index: 9, kind: input, shape index: {}]
  %s10 = inlined_call_operand.vmem [shape: f32[1,128], index: 10, kind: input, shape index: {}]
  %s11 = inlined_call_operand.vmem [shape: bf16[128,128], index: 11, kind: input, shape index: {}]
  %s12 = inlined_call_operand.vmem [shape: f32[1,128], index: 12, kind: input, shape index: {}]
  %s13 = inlined_call_operand.vmem [shape: bf16[128,128], index: 13, kind: input, shape index: {}]
  %s14 = inlined_call_operand.vmem [shape: f32[1,128], index: 14, kind: input, shape index: {}]
  %s15 = inlined_call_operand.hbm [shape: f32[1,64], index: 15, kind: output, shape index: {0}]
  %s16 = inlined_call_operand.hbm [shape: f32[1,64], index: 16, kind: output, shape index: {1}]
  %s17 = inlined_call_operand.hbm [shape: f32[64,128], index: 17, kind: output, shape index: {2}]
  %s18 = inlined_call_operand.hbm [shape: f32[64,128], index: 18, kind: output, shape index: {3}]
  %s19 = inlined_call_operand.hbm [shape: f32[64,128], index: 19, kind: output, shape index: {4}]
  %20 = xla_tuple %s15, %s16, %s17, %s18, %s19
  %s21 = sld [smem:[#allocation0]]
  $region110: #{tpu_custom_call.1} parent=0
    _
  %s23 = ssub.s32 1, %s21
  %s24 = scalar_select 0, %s23, %s21
  $region1: #{tpu_custom_call.1} parent=0
    #allocation2 [shape = 'u8[8192]{0}', space=vmem, size = 0x2000, scoped, tag = 'input window, operand 3, single buffered']
    #allocation3 [shape = 's32[1]{0}', space=sflag, size = 0x4, scoped, tag = 'scoped memory for tpu_custom_call.1']
    #allocation4 [shape = 's32[1]{0}', space=sflag, size = 0x4, scoped, tag = 'scoped memory for tpu_custom_call.1']
    #allocation5 [shape = 'u8[8192]{0}', space=vmem, size = 0x2000, scoped, tag = 'input window, operand 9, single buffered']
    #allocation6 [shape = 's32[1]{0}', space=sflag, size = 0x4, scoped, tag = 'scoped memory for tpu_custom_call.1']
    #allocation7 [shape = 'u8[512]{0}', space=vmem, size = 0x400, scoped, tag = 'output window, operand 0, single buffered']
    #allocation8 [shape = 'u8[512]{0}', space=vmem, size = 0x400, scoped, tag = 'output window, operand 1, single buffered']
    #allocation9 [shape = 's32[1]{0}', space=sflag, size = 0x4, scoped, tag = 'scoped memory for tpu_custom_call.1']
    #allocation10 [shape = 'u8[32768]{0}', space=vmem, size = 0x8000, scoped, tag = 'output window, operand 2, single buffered']
    #allocation11 [shape = 'u8[32768]{0}', space=vmem, size = 0x8000, scoped, tag = 'output window, operand 3, single buffered']
    #allocation12 [shape = 's32[1]{0}', space=sflag, size = 0x4, scoped, tag = 'scoped memory for tpu_custom_call.1']
    #allocation13 [shape = 'u8[32768]{0}', space=vmem, size = 0x8000, scoped, tag = 'output window, operand 4, single buffered']
    %25 = vsyncpa [#allocation3], 0
    %26 = vsyncpa [#allocation6], 0
    %27 = vsyncpa [#allocation4], 0
    %28 = vsyncpa [#allocation9], 0
    %29 = vsyncpa [#allocation12], 0
    // Predicated region
    $region2: #{tpu_custom_call.1} parent=1 // pred_check
      _
    $region3: #{tpu_custom_call.1} parent=1 // pred_check_branch
      %31 = sbr.rel (0) target = $region5
    $region4: #{tpu_custom_call.1} parent=1 // pred_region
      _
    $region5: #{tpu_custom_call.1} parent=1 // pred_fallthru
      _
    // Predicated region
    $region6: #{tpu_custom_call.1} parent=1 // pred_check
      _
    $region7: #{tpu_custom_call.1} parent=1 // pred_check_branch
      %33 = sbr.rel (0) target = $region9
    $region8: #{tpu_custom_call.1} parent=1 // pred_region
      _
    $region9: #{tpu_custom_call.1} parent=1 // pred_fallthru
      _
    // Predicated region
    $region10: #{tpu_custom_call.1} parent=1 // pred_check
      _
    $region11: #{tpu_custom_call.1} parent=1 // pred_check_branch
      %35 = sbr.rel (0) target = $region13
    $region12: #{tpu_custom_call.1} parent=1 // pred_region
      _
    $region13: #{tpu_custom_call.1} parent=1 // pred_fallthru
      _
    // Predicated region
    $region14: #{tpu_custom_call.1} parent=1 // pred_check
      _
    $region15: #{tpu_custom_call.1} parent=1 // pred_check_branch
      %37 = sbr.rel (0) target = $region17
    $region16: #{tpu_custom_call.1} parent=1 // pred_region
      %s39 = ssub.s32 256, 256
      %40 = vsyncadd [#allocation3], %s39
      %s41 = sshll.u32 [#allocation2], 4
      %s42 = int_to_ptr.vmem [resolvable:$true] %s41
      %47 = dma.hbm_to_vmem [thread:$0]  %s3, 256, %s42, [#allocation3], 64, 64, 4
    $region17: #{tpu_custom_call.1} parent=1 // pred_fallthru
      _
    // Predicated region
    $region18: #{tpu_custom_call.1} parent=1 // pred_check
      _
    $region19: #{tpu_custom_call.1} parent=1 // pred_check_branch
      %49 = sbr.rel (0) target = $region21
    $region20: #{tpu_custom_call.1} parent=1 // pred_region
      _
    $region21: #{tpu_custom_call.1} parent=1 // pred_fallthru
      _
    // Predicated region
    $region22: #{tpu_custom_call.1} parent=1 // pred_check
      _
    $region23: #{tpu_custom_call.1} parent=1 // pred_check_branch
      %51 = sbr.rel (0) target = $region25
    $region24: #{tpu_custom_call.1} parent=1 // pred_region
      _
    $region25: #{tpu_custom_call.1} parent=1 // pred_fallthru
      _
    // Predicated region
    $region26: #{tpu_custom_call.1} parent=1 // pred_check
      _
    $region27: #{tpu_custom_call.1} parent=1 // pred_check_branch
      %53 = sbr.rel (0) target = $region29
    $region28: #{tpu_custom_call.1} parent=1 // pred_region
      _
    $region29: #{tpu_custom_call.1} parent=1 // pred_fallthru
      _
    // Predicated region
    $region30: #{tpu_custom_call.1} parent=1 // pred_check
      _
    $region31: #{tpu_custom_call.1} parent=1 // pred_check_branch
      %55 = sbr.rel (0) target = $region33
    $region32: #{tpu_custom_call.1} parent=1 // pred_region
      _
    $region33: #{tpu_custom_call.1} parent=1 // pred_fallthru
      _
    // Predicated region
    $region34: #{tpu_custom_call.1} parent=1 // pred_check
      _
    $region35: #{tpu_custom_call.1} parent=1 // pred_check_branch
      %57 = sbr.rel (0) target = $region37
    $region36: #{tpu_custom_call.1} parent=1 // pred_region
      _
    $region37: #{tpu_custom_call.1} parent=1 // pred_fallthru
      _
    // Predicated region
    $region38: #{tpu_custom_call.1} parent=1 // pred_check
      _
    $region39: #{tpu_custom_call.1} parent=1 // pred_check_branch
      %59 = sbr.rel (0) target = $region41
    $region40: #{tpu_custom_call.1} parent=1 // pred_region
      %s61 = ssub.s32 256, 256
      %62 = vsyncadd [#allocation6], %s61
      %s63 = sshll.u32 [#allocation5], 4
      %s64 = int_to_ptr.vmem [resolvable:$true] %s63
      %69 = dma.hbm_to_vmem [thread:$0]  %s9, 256, %s64, [#allocation6], 64, 64, 4
    $region41: #{tpu_custom_call.1} parent=1 // pred_fallthru
      _
    // Predicated region
    $region42: #{tpu_custom_call.1} parent=1 // pred_check
      _
    $region43: #{tpu_custom_call.1} parent=1 // pred_check_branch
      %71 = sbr.rel (0) target = $region45
    $region44: #{tpu_custom_call.1} parent=1 // pred_region
      _
    $region45: #{tpu_custom_call.1} parent=1 // pred_fallthru
      _
    // Predicated region
    $region46: #{tpu_custom_call.1} parent=1 // pred_check
      _
    $region47: #{tpu_custom_call.1} parent=1 // pred_check_branch
      %73 = sbr.rel (0) target = $region49
    $region48: #{tpu_custom_call.1} parent=1 // pred_region
      _
    $region49: #{tpu_custom_call.1} parent=1 // pred_fallthru
      _
    // Predicated region
    $region50: #{tpu_custom_call.1} parent=1 // pred_check
      _
    $region51: #{tpu_custom_call.1} parent=1 // pred_check_branch
      %75 = sbr.rel (0) target = $region53
    $region52: #{tpu_custom_call.1} parent=1 // pred_region
      _
    $region53: #{tpu_custom_call.1} parent=1 // pred_fallthru
      _
    // Predicated region
    $region54: #{tpu_custom_call.1} parent=1 // pred_check
      _
    $region55: #{tpu_custom_call.1} parent=1 // pred_check_branch
      %77 = sbr.rel (0) target = $region57
    $region56: #{tpu_custom_call.1} parent=1 // pred_region
      _
    $region57: #{tpu_custom_call.1} parent=1 // pred_fallthru
      _
    // Predicated region
    $region58: #{tpu_custom_call.1} parent=1 // pred_check
      _
    $region59: #{tpu_custom_call.1} parent=1 // pred_check_branch
      %79 = sbr.rel (0) target = $region61
    $region60: #{tpu_custom_call.1} parent=1 // pred_region
      _
    $region61: #{tpu_custom_call.1} parent=1 // pred_fallthru
      _
    // Predicated region
    $region62: #{tpu_custom_call.1} parent=1 // pred_check
      _
    $region63: #{tpu_custom_call.1} parent=1 // pred_check_branch
      %81 = sbr.rel (0) target = $region65
    $region64: #{tpu_custom_call.1} parent=1 // pred_region
      %82 = dma.done [#allocation3], 256
    $region65: #{tpu_custom_call.1} parent=1 // pred_fallthru
      _
    // Predicated region
    $region66: #{tpu_custom_call.1} parent=1 // pred_check
      _
    $region67: #{tpu_custom_call.1} parent=1 // pred_check_branch
      %84 = sbr.rel (0) target = $region69
    $region68: #{tpu_custom_call.1} parent=1 // pred_region
      %85 = dma.done [#allocation6], 256
    $region69: #{tpu_custom_call.1} parent=1 // pred_fallthru
      _
    %v87 = vld [vmem:[%s0] sm:$0xf]
    %v88 = vld [vmem:[%s0 + $0x4] sm:$0xf]
    %v89 = vld [vmem:[%s0 + $0x8] sm:$0xf]
    %v90 = vld [vmem:[%s0 + $0xc] sm:$0xf]
    %v91 = vld [vmem:[%s0 + $0x10] sm:$0xf]
    %v92 = vld [vmem:[%s0 + $0x14] sm:$0xf]
    %v93 = vld [vmem:[%s0 + $0x18] sm:$0xf]
    %v94 = vld [vmem:[%s0 + $0x1c] sm:$0xf]
    %v95 = vld [vmem:[#allocation2] sm:$0xf]
    %v96 = vld [vmem:[#allocation2 + $0x4] sm:$0xf]
    %v97 = vld [vmem:[#allocation2 + $0x8] sm:$0xf]
    %v98 = vld [vmem:[#allocation2 + $0xc] sm:$0xf]
    %v99 = vld [vmem:[%s4] sm:$0x1]
    %v101 = vlaneseq
    %v102 = vshrl.u32 %v101, 7
    %v103 = vsub.s32 0, %v102
    %v104 = vrot.slane %v99, %v103
    %v114 = vunpack.c.l.b16 %v87
    %v115 = vunpack.c.l.b16 %v88
    %v116 = vunpack.c.l.b16 %v89
    %v117 = vunpack.c.l.b16 %v90
    %v118 = vunpack.c.l.b16 %v91
    %v119 = vunpack.c.l.b16 %v92
    %v120 = vunpack.c.l.b16 %v93
    %v121 = vunpack.c.l.b16 %v94
    %v122 = vpack.c.b16 %v115, %v114
    %v123 = vpack.c.b16 %v117, %v116
    %v124 = vpack.c.b16 %v119, %v118
    %v125 = vpack.c.b16 %v121, %v120
    %v130 = vunpack.c.l.b16 %v95
    %v131 = vunpack.c.l.b16 %v96
    %v132 = vunpack.c.l.b16 %v97
    %v133 = vunpack.c.l.b16 %v98
    %v134 = vpack.c.b16 %v131, %v130
    %v135 = vpack.c.b16 %v133, %v132
    %vm138 = vcmask 261120
    %v140 = vsel %vm138, %v122, 0
    %v143 = vsel %vm138, %v123, 0
    %v146 = vsel %vm138, %v124, 0
    %v149 = vsel %vm138, %v125, 0
    %151 = vmatprep.subr.bf16.mxu0 0
    %152 = vmatpush1.bf16.msra.mxu0 0
    %153 = vmatprep.subr.bf16.mxu0 0
    %154 = vmatpush1.bf16.msra.mxu0 0
    %155 = vmatprep.subr.bf16.mxu0 0
    %156 = vmatpush1.bf16.msra.mxu0 0
    %157 = vmatprep.subr.bf16.mxu0 0
    %158 = vmatpush1.bf16.msra.mxu0 0
    %159 = vmatprep.subr.bf16.mxu0 0
    %160 = vmatpush1.bf16.msra.mxu0 0
    %161 = vmatprep.subr.bf16.mxu0 0
    %162 = vmatpush1.bf16.msra.mxu0 0
    %163 = vmatprep.subr.bf16.mxu0 0
    %164 = vmatpush1.bf16.msra.mxu0 %v135
    %165 = vmatprep.subr.bf16.mxu0 0
    %166 = vmatpush1.bf16.msra.mxu0 %v134
    %167 = vmatprep.subr.bf16.mxu0 0
    %168 = vmatpush2.bf16.msra.mxu0 0
    %169 = vmatprep.subr.bf16.mxu0 0
    %170 = vmatpush2.bf16.msra.mxu0 0
    %171 = vmatprep.subr.bf16.mxu0 0
    %172 = vmatpush2.bf16.msra.mxu0 0
    %173 = vmatprep.subr.bf16.mxu0 0
    %174 = vmatpush2.bf16.msra.mxu0 0
    %175 = vmatprep.subr.bf16.mxu0 0
    %176 = vmatpush2.bf16.msra.mxu0 0
    %177 = vmatprep.subr.bf16.mxu0 0
    %178 = vmatpush2.bf16.msra.mxu0 0
    %179 = vmatprep.subr.bf16.mxu0 0
    %180 = vmatpush2.bf16.msra.mxu0 0
    %181 = vmatprep.subr.bf16.mxu0 0
    %182 = vmatpush2.bf16.msra.mxu0 0
    %183 = vmatprep.mubr.bf16.mxu0 0
    %184 = vmatmul.mubr.bf16.gmra.mxu0 %v140
    %v185 = vpop.f32.mrf.mxu0
    %v186 = vadd.f32 %v104, %v185
    %v187 = vpop.f32.mrf.mxu0
    %v188 = vpop.f32.mrf.mxu0
    %v189 = vadd.f32 %v104, %v188
    %v190 = vpop.f32.mrf.mxu0
    %191 = vmatprep.mubr.bf16.mxu0 0
    %192 = vmatmul.mubr.bf16.gmra.mxu0 %v143
    %v193 = vpop.f32.mrf.mxu0
    %v194 = vadd.f32 %v104, %v193
    %v195 = vpop.f32.mrf.mxu0
    %v196 = vpop.f32.mrf.mxu0
    %v197 = vadd.f32 %v104, %v196
    %v198 = vpop.f32.mrf.mxu0
    %199 = vmatprep.mubr.bf16.mxu0 0
    %200 = vmatmul.mubr.bf16.gmra.mxu0 %v146
    %v201 = vpop.f32.mrf.mxu0
    %v202 = vadd.f32 %v104, %v201
    %v203 = vpop.f32.mrf.mxu0
    %v204 = vpop.f32.mrf.mxu0
    %v205 = vadd.f32 %v104, %v204
    %v206 = vpop.f32.mrf.mxu0
    %207 = vmatprep.mubr.bf16.mxu0 0
    %208 = vmatmul.mubr.bf16.gmra.mxu0 %v149
    %v209 = vpop.f32.mrf.mxu0
    %v210 = vadd.f32 %v104, %v209
    %v211 = vpop.f32.mrf.mxu0
    %v212 = vpop.f32.mrf.mxu0
    %v213 = vadd.f32 %v104, %v212
    %v214 = vpop.f32.mrf.mxu0
    %215 = vdwg.mxu0
    %v216 = vmax.f32 %v186, 0.0
    %v217 = vmax.f32 %v189, 0.0
    %v218 = vmax.f32 %v194, 0.0
    %v219 = vmax.f32 %v197, 0.0
    %v220 = vmax.f32 %v202, 0.0
    %v221 = vmax.f32 %v205, 0.0
    %v222 = vmax.f32 %v210, 0.0
    %v223 = vmax.f32 %v213, 0.0
    %v224 = vpack.c.bf16 %v217, %v216
    %v225 = vpack.c.bf16 %v219, %v218
    %v226 = vpack.c.bf16 %v221, %v220
    %v227 = vpack.c.bf16 %v223, %v222
    %v228 = vld [vmem:[%s5] sm:$0xf]
    %v229 = vld [vmem:[%s5 + $0x4] sm:$0xf]
    %v230 = vld [vmem:[%s5 + $0x8] sm:$0xf]
    %v231 = vld [vmem:[%s5 + $0xc] sm:$0xf]
    %v232 = vld [vmem:[%s5 + $0x10] sm:$0xf]
    %v233 = vld [vmem:[%s5 + $0x14] sm:$0xf]
    %v234 = vld [vmem:[%s5 + $0x18] sm:$0xf]
    %v235 = vld [vmem:[%s5 + $0x1c] sm:$0xf]
    %v236 = vld [vmem:[%s5 + $0x20] sm:$0xf]
    %v237 = vld [vmem:[%s5 + $0x24] sm:$0xf]
    %v238 = vld [vmem:[%s5 + $0x28] sm:$0xf]
    %v239 = vld [vmem:[%s5 + $0x2c] sm:$0xf]
    %v240 = vld [vmem:[%s5 + $0x30] sm:$0xf]
    %v241 = vld [vmem:[%s5 + $0x34] sm:$0xf]
    %v242 = vld [vmem:[%s5 + $0x38] sm:$0xf]
    %v243 = vld [vmem:[%s5 + $0x3c] sm:$0xf]
    %v244 = vld [vmem:[%s6] sm:$0x1]
    %v246 = vlaneseq
    %v247 = vshrl.u32 %v246, 7
    %v248 = vsub.s32 0, %v247
    %v249 = vrot.slane %v244, %v248
    %v267 = vunpack.c.l.b16 %v228
    %v268 = vunpack.c.l.b16 %v229
    %v269 = vunpack.c.l.b16 %v230
    %v270 = vunpack.c.l.b16 %v231
    %v271 = vunpack.c.l.b16 %v232
    %v272 = vunpack.c.l.b16 %v233
    %v273 = vunpack.c.l.b16 %v234
    %v274 = vunpack.c.l.b16 %v235
    %v275 = vunpack.c.l.b16 %v236
    %v276 = vunpack.c.l.b16 %v237
    %v277 = vunpack.c.l.b16 %v238
    %v278 = vunpack.c.l.b16 %v239
    %v279 = vunpack.c.l.b16 %v240
    %v280 = vunpack.c.l.b16 %v241
    %v281 = vunpack.c.l.b16 %v242
    %v282 = vunpack.c.l.b16 %v243
    %v283 = vpack.c.b16 %v268, %v267
    %v284 = vpack.c.b16 %v270, %v269
    %v285 = vpack.c.b16 %v272, %v271
    %v286 = vpack.c.b16 %v274, %v273
    %v287 = vpack.c.b16 %v276, %v275
    %v288 = vpack.c.b16 %v278, %v277
    %v289 = vpack.c.b16 %v280, %v279
    %v290 = vpack.c.b16 %v282, %v281
    %299 = vmatprep.subr.bf16.mxu0 0
    %300 = vmatpush1.bf16.msra.mxu0 %v290
    %301 = vmatprep.subr.bf16.mxu0 0
    %302 = vmatpush1.bf16.msra.mxu0 %v289
    %303 = vmatprep.subr.bf16.mxu0 0
    %304 = vmatpush1.bf16.msra.mxu0 %v288
    %305 = vmatprep.subr.bf16.mxu0 0
    %306 = vmatpush1.bf16.msra.mxu0 %v287
    %307 = vmatprep.subr.bf16.mxu0 0
    %308 = vmatpush1.bf16.msra.mxu0 %v286
    %309 = vmatprep.subr.bf16.mxu0 0
    %310 = vmatpush1.bf16.msra.mxu0 %v285
    %311 = vmatprep.subr.bf16.mxu0 0
    %312 = vmatpush1.bf16.msra.mxu0 %v284
    %313 = vmatprep.subr.bf16.mxu0 0
    %314 = vmatpush1.bf16.msra.mxu0 %v283
    %315 = vmatprep.subr.bf16.mxu0 0
    %316 = vmatpush2.bf16.msra.mxu0 0
    %317 = vmatprep.subr.bf16.mxu0 0
    %318 = vmatpush2.bf16.msra.mxu0 0
    %319 = vmatprep.subr.bf16.mxu0 0
    %320 = vmatpush2.bf16.msra.mxu0 0
    %321 = vmatprep.subr.bf16.mxu0 0
    %322 = vmatpush2.bf16.msra.mxu0 0
    %323 = vmatprep.subr.bf16.mxu0 0
    %324 = vmatpush2.bf16.msra.mxu0 0
    %325 = vmatprep.subr.bf16.mxu0 0
    %326 = vmatpush2.bf16.msra.mxu0 0
    %327 = vmatprep.subr.bf16.mxu0 0
    %328 = vmatpush2.bf16.msra.mxu0 0
    %329 = vmatprep.subr.bf16.mxu0 0
    %330 = vmatpush2.bf16.msra.mxu0 0
    %331 = vmatprep.mubr.bf16.mxu0 0
    %332 = vmatmul.mubr.bf16.gmra.mxu0 %v224
    %v333 = vpop.f32.mrf.mxu0
    %v334 = vadd.f32 %v249, %v333
    %v335 = vpop.f32.mrf.mxu0
    %v336 = vpop.f32.mrf.mxu0
    %v337 = vadd.f32 %v249, %v336
    %v338 = vpop.f32.mrf.mxu0
    %339 = vmatprep.mubr.bf16.mxu0 0
    %340 = vmatmul.mubr.bf16.gmra.mxu0 %v225
    %v341 = vpop.f32.mrf.mxu0
    %v342 = vadd.f32 %v249, %v341
    %v343 = vpop.f32.mrf.mxu0
    %v344 = vpop.f32.mrf.mxu0
    %v345 = vadd.f32 %v249, %v344
    %v346 = vpop.f32.mrf.mxu0
    %347 = vmatprep.mubr.bf16.mxu0 0
    %348 = vmatmul.mubr.bf16.gmra.mxu0 %v226
    %v349 = vpop.f32.mrf.mxu0
    %v350 = vadd.f32 %v249, %v349
    %v351 = vpop.f32.mrf.mxu0
    %v352 = vpop.f32.mrf.mxu0
    %v353 = vadd.f32 %v249, %v352
    %v354 = vpop.f32.mrf.mxu0
    %355 = vmatprep.mubr.bf16.mxu0 0
    %356 = vmatmul.mubr.bf16.gmra.mxu0 %v227
    %v357 = vpop.f32.mrf.mxu0
    %v358 = vadd.f32 %v249, %v357
    %v359 = vpop.f32.mrf.mxu0
    %v360 = vpop.f32.mrf.mxu0
    %v361 = vadd.f32 %v249, %v360
    %v362 = vpop.f32.mrf.mxu0
    %363 = vdwg.mxu0
    %v364 = vmax.f32 %v334, 0.0
    %v365 = vmax.f32 %v337, 0.0
    %v366 = vmax.f32 %v342, 0.0
    %v367 = vmax.f32 %v345, 0.0
    %v368 = vmax.f32 %v350, 0.0
    %v369 = vmax.f32 %v353, 0.0
    %v370 = vmax.f32 %v358, 0.0
    %v371 = vmax.f32 %v361, 0.0
    %v372 = vpack.c.bf16 %v365, %v364
    %v373 = vpack.c.bf16 %v367, %v366
    %v374 = vpack.c.bf16 %v369, %v368
    %v375 = vpack.c.bf16 %v371, %v370
    %v376 = vld [vmem:[%s7] sm:$0xf]
    %v377 = vld [vmem:[%s7 + $0x4] sm:$0xf]
    %v378 = vld [vmem:[%s7 + $0x8] sm:$0xf]
    %v379 = vld [vmem:[%s7 + $0xc] sm:$0xf]
    %v380 = vld [vmem:[%s7 + $0x10] sm:$0xf]
    %v381 = vld [vmem:[%s7 + $0x14] sm:$0xf]
    %v382 = vld [vmem:[%s7 + $0x18] sm:$0xf]
    %v383 = vld [vmem:[%s7 + $0x1c] sm:$0xf]
    %v384 = vld [vmem:[%s7 + $0x20] sm:$0xf]
    %v385 = vld [vmem:[%s7 + $0x24] sm:$0xf]
    %v386 = vld [vmem:[%s7 + $0x28] sm:$0xf]
    %v387 = vld [vmem:[%s7 + $0x2c] sm:$0xf]
    %v388 = vld [vmem:[%s7 + $0x30] sm:$0xf]
    %v389 = vld [vmem:[%s7 + $0x34] sm:$0xf]
    %v390 = vld [vmem:[%s7 + $0x38] sm:$0xf]
    %v391 = vld [vmem:[%s7 + $0x3c] sm:$0xf]
    %v392 = vld [vmem:[%s8] sm:$0x1]
    %v394 = vlaneseq
    %v395 = vshrl.u32 %v394, 7
    %v396 = vsub.s32 0, %v395
    %v397 = vrot.slane %v392, %v396
    %v415 = vunpack.c.l.b16 %v376
    %v416 = vunpack.c.l.b16 %v377
    %v417 = vunpack.c.l.b16 %v378
    %v418 = vunpack.c.l.b16 %v379
    %v419 = vunpack.c.l.b16 %v380
    %v420 = vunpack.c.l.b16 %v381
    %v421 = vunpack.c.l.b16 %v382
    %v422 = vunpack.c.l.b16 %v383
    %v423 = vunpack.c.l.b16 %v384
    %v424 = vunpack.c.l.b16 %v385
    %v425 = vunpack.c.l.b16 %v386
    %v426 = vunpack.c.l.b16 %v387
    %v427 = vunpack.c.l.b16 %v388
    %v428 = vunpack.c.l.b16 %v389
    %v429 = vunpack.c.l.b16 %v390
    %v430 = vunpack.c.l.b16 %v391
    %v431 = vpack.c.b16 %v416, %v415
    %v432 = vpack.c.b16 %v418, %v417
    %v433 = vpack.c.b16 %v420, %v419
    %v434 = vpack.c.b16 %v422, %v421
    %v435 = vpack.c.b16 %v424, %v423
    %v436 = vpack.c.b16 %v426, %v425
    %v437 = vpack.c.b16 %v428, %v427
    %v438 = vpack.c.b16 %v430, %v429
    %447 = vmatprep.subr.bf16.mxu0 0
    %448 = vmatpush1.bf16.msra.mxu0 %v438
    %449 = vmatprep.subr.bf16.mxu0 0
    %450 = vmatpush1.bf16.msra.mxu0 %v437
    %451 = vmatprep.subr.bf16.mxu0 0
    %452 = vmatpush1.bf16.msra.mxu0 %v436
    %453 = vmatprep.subr.bf16.mxu0 0
    %454 = vmatpush1.bf16.msra.mxu0 %v435
    %455 = vmatprep.subr.bf16.mxu0 0
    %456 = vmatpush1.bf16.msra.mxu0 %v434
    %457 = vmatprep.subr.bf16.mxu0 0
    %458 = vmatpush1.bf16.msra.mxu0 %v433
    %459 = vmatprep.subr.bf16.mxu0 0
    %460 = vmatpush1.bf16.msra.mxu0 %v432
    %461 = vmatprep.subr.bf16.mxu0 0
    %462 = vmatpush1.bf16.msra.mxu0 %v431
    %463 = vmatprep.subr.bf16.mxu0 0
    %464 = vmatpush2.bf16.msra.mxu0 0
    %465 = vmatprep.subr.bf16.mxu0 0
    %466 = vmatpush2.bf16.msra.mxu0 0
    %467 = vmatprep.subr.bf16.mxu0 0
    %468 = vmatpush2.bf16.msra.mxu0 0
    %469 = vmatprep.subr.bf16.mxu0 0
    %470 = vmatpush2.bf16.msra.mxu0 0
    %471 = vmatprep.subr.bf16.mxu0 0
    %472 = vmatpush2.bf16.msra.mxu0 0
    %473 = vmatprep.subr.bf16.mxu0 0
    %474 = vmatpush2.bf16.msra.mxu0 0
    %475 = vmatprep.subr.bf16.mxu0 0
    %476 = vmatpush2.bf16.msra.mxu0 0
    %477 = vmatprep.subr.bf16.mxu0 0
    %478 = vmatpush2.bf16.msra.mxu0 0
    %479 = vmatprep.mubr.bf16.mxu0 0
    %480 = vmatmul.mubr.bf16.gmra.mxu0 %v372
    %v481 = vpop.f32.mrf.mxu0
    %v482 = vadd.f32 %v397, %v481
    %v483 = vpop.f32.mrf.mxu0
    %v484 = vpop.f32.mrf.mxu0
    %v485 = vadd.f32 %v397, %v484
    %v486 = vpop.f32.mrf.mxu0
    %487 = vmatprep.mubr.bf16.mxu0 0
    %488 = vmatmul.mubr.bf16.gmra.mxu0 %v373
    %v489 = vpop.f32.mrf.mxu0
    %v490 = vadd.f32 %v397, %v489
    %v491 = vpop.f32.mrf.mxu0
    %v492 = vpop.f32.mrf.mxu0
    %v493 = vadd.f32 %v397, %v492
    %v494 = vpop.f32.mrf.mxu0
    %495 = vmatprep.mubr.bf16.mxu0 0
    %496 = vmatmul.mubr.bf16.gmra.mxu0 %v374
    %v497 = vpop.f32.mrf.mxu0
    %v498 = vadd.f32 %v397, %v497
    %v499 = vpop.f32.mrf.mxu0
    %v500 = vpop.f32.mrf.mxu0
    %v501 = vadd.f32 %v397, %v500
    %v502 = vpop.f32.mrf.mxu0
    %503 = vmatprep.mubr.bf16.mxu0 0
    %504 = vmatmul.mubr.bf16.gmra.mxu0 %v375
    %v505 = vpop.f32.mrf.mxu0
    %v506 = vadd.f32 %v397, %v505
    %v507 = vpop.f32.mrf.mxu0
    %v508 = vpop.f32.mrf.mxu0
    %v509 = vadd.f32 %v397, %v508
    %v510 = vpop.f32.mrf.mxu0
    %511 = vdwg.mxu0
    %v512 = vmax.f32 %v482, 0.0
    %v513 = vmax.f32 %v485, 0.0
    %v514 = vmax.f32 %v490, 0.0
    %v515 = vmax.f32 %v493, 0.0
    %v516 = vmax.f32 %v498, 0.0
    %v517 = vmax.f32 %v501, 0.0
    %v518 = vmax.f32 %v506, 0.0
    %v519 = vmax.f32 %v509, 0.0
    %v520 = vpack.c.bf16 %v513, %v512
    %v521 = vpack.c.bf16 %v515, %v514
    %v522 = vpack.c.bf16 %v517, %v516
    %v523 = vpack.c.bf16 %v519, %v518
    %v524 = vld [vmem:[%s1] sm:$0xf]
    %v525 = vld [vmem:[%s1 + $0x4] sm:$0xf]
    %v526 = vld [vmem:[%s1 + $0x8] sm:$0xf]
    %v527 = vld [vmem:[%s1 + $0xc] sm:$0xf]
    %v528 = vld [vmem:[%s1 + $0x10] sm:$0xf]
    %v529 = vld [vmem:[%s1 + $0x14] sm:$0xf]
    %v530 = vld [vmem:[%s1 + $0x18] sm:$0xf]
    %v531 = vld [vmem:[%s1 + $0x1c] sm:$0xf]
    %v532 = vld [vmem:[%s2] sm:$0xf]
    %v533 = vld [vmem:[%s2 + $0x4] sm:$0xf]
    %v534 = vld [vmem:[%s2 + $0x8] sm:$0xf]
    %v535 = vld [vmem:[%s2 + $0xc] sm:$0xf]
    %v536 = vld [vmem:[%s2 + $0x10] sm:$0xf]
    %v537 = vld [vmem:[%s2 + $0x14] sm:$0xf]
    %v538 = vld [vmem:[%s2 + $0x18] sm:$0xf]
    %v539 = vld [vmem:[%s2 + $0x1c] sm:$0xf]
    %v548 = vunpack.c.l.b16 %v524
    %v549 = vunpack.c.l.b16 %v525
    %v550 = vunpack.c.l.b16 %v526
    %v551 = vunpack.c.l.b16 %v527
    %v552 = vunpack.c.l.b16 %v528
    %v553 = vunpack.c.l.b16 %v529
    %v554 = vunpack.c.l.b16 %v530
    %v555 = vunpack.c.l.b16 %v531
    %v556 = vpack.c.b16 %v549, %v548
    %v557 = vpack.c.b16 %v551, %v550
    %v558 = vpack.c.b16 %v553, %v552
    %v559 = vpack.c.b16 %v555, %v554
    %v568 = vunpack.c.l.b16 %v532
    %v569 = vunpack.c.l.b16 %v533
    %v570 = vunpack.c.l.b16 %v534
    %v571 = vunpack.c.l.b16 %v535
    %v572 = vunpack.c.l.b16 %v536
    %v573 = vunpack.c.l.b16 %v537
    %v574 = vunpack.c.l.b16 %v538
    %v575 = vunpack.c.l.b16 %v539
    %v576 = vpack.c.b16 %v569, %v568
    %v577 = vpack.c.b16 %v571, %v570
    %v578 = vpack.c.b16 %v573, %v572
    %v579 = vpack.c.b16 %v575, %v574
    %v580 = vld [vmem:[#allocation5] sm:$0xf]
    %v581 = vld [vmem:[#allocation5 + $0x4] sm:$0xf]
    %v582 = vld [vmem:[#allocation5 + $0x8] sm:$0xf]
    %v583 = vld [vmem:[#allocation5 + $0xc] sm:$0xf]
    %v584 = vld [vmem:[%s10] sm:$0x1]
    %v586 = vlaneseq
    %v587 = vshrl.u32 %v586, 7
    %v588 = vsub.s32 0, %v587
    %v589 = vrot.slane %v584, %v588
    %v595 = vunpack.c.l.b16 %v580
    %v596 = vunpack.c.l.b16 %v581
    %v597 = vunpack.c.l.b16 %v582
    %v598 = vunpack.c.l.b16 %v583
    %v599 = vpack.c.b16 %v596, %v595
    %v600 = vpack.c.b16 %v598, %v597
    %v604 = vsel %vm138, %v520, 0
    %v607 = vsel %vm138, %v521, 0
    %v610 = vsel %vm138, %v522, 0
    %v613 = vsel %vm138, %v523, 0
    %v616 = vsel %vm138, %v556, 0
    %v619 = vsel %vm138, %v557, 0
    %v622 = vsel %vm138, %v558, 0
    %v625 = vsel %vm138, %v559, 0
    %v628 = vsel %vm138, %v576, 0
    %v631 = vsel %vm138, %v577, 0
    %v634 = vsel %vm138, %v578, 0
    %v637 = vsel %vm138, %v579, 0
    %639 = vmatprep.subr.bf16.mxu0 0
    %640 = vmatpush1.bf16.msra.mxu0 0
    %641 = vmatprep.subr.bf16.mxu0 0
    %642 = vmatpush1.bf16.msra.mxu0 0
    %643 = vmatprep.subr.bf16.mxu0 0
    %644 = vmatpush1.bf16.msra.mxu0 0
    %645 = vmatprep.subr.bf16.mxu0 0
    %646 = vmatpush1.bf16.msra.mxu0 0
    %647 = vmatprep.subr.bf16.mxu0 0
    %648 = vmatpush1.bf16.msra.mxu0 0
    %649 = vmatprep.subr.bf16.mxu0 0
    %650 = vmatpush1.bf16.msra.mxu0 0
    %651 = vmatprep.subr.bf16.mxu0 0
    %652 = vmatpush1.bf16.msra.mxu0 %v600
    %653 = vmatprep.subr.bf16.mxu0 0
    %654 = vmatpush1.bf16.msra.mxu0 %v599
    %655 = vmatprep.subr.bf16.mxu0 0
    %656 = vmatpush2.bf16.msra.mxu0 0
    %657 = vmatprep.subr.bf16.mxu0 0
    %658 = vmatpush2.bf16.msra.mxu0 0
    %659 = vmatprep.subr.bf16.mxu0 0
    %660 = vmatpush2.bf16.msra.mxu0 0
    %661 = vmatprep.subr.bf16.mxu0 0
    %662 = vmatpush2.bf16.msra.mxu0 0
    %663 = vmatprep.subr.bf16.mxu0 0
    %664 = vmatpush2.bf16.msra.mxu0 0
    %665 = vmatprep.subr.bf16.mxu0 0
    %666 = vmatpush2.bf16.msra.mxu0 0
    %667 = vmatprep.subr.bf16.mxu0 0
    %668 = vmatpush2.bf16.msra.mxu0 0
    %669 = vmatprep.subr.bf16.mxu0 0
    %670 = vmatpush2.bf16.msra.mxu0 0
    %671 = vmatprep.mubr.bf16.mxu0 0
    %672 = vmatmul.mubr.bf16.gmra.mxu0 %v604
    %v673 = vpop.f32.mrf.mxu0
    %v674 = vadd.f32 %v589, %v673
    %v675 = vpop.f32.mrf.mxu0
    %v676 = vpop.f32.mrf.mxu0
    %v677 = vadd.f32 %v589, %v676
    %v678 = vpop.f32.mrf.mxu0
    %679 = vmatprep.mubr.bf16.mxu0 0
    %680 = vmatmul.mubr.bf16.gmra.mxu0 %v607
    %v681 = vpop.f32.mrf.mxu0
    %v682 = vadd.f32 %v589, %v681
    %v683 = vpop.f32.mrf.mxu0
    %v684 = vpop.f32.mrf.mxu0
    %v685 = vadd.f32 %v589, %v684
    %v686 = vpop.f32.mrf.mxu0
    %687 = vmatprep.mubr.bf16.mxu0 0
    %688 = vmatmul.mubr.bf16.gmra.mxu0 %v610
    %v689 = vpop.f32.mrf.mxu0
    %v690 = vadd.f32 %v589, %v689
    %v691 = vpop.f32.mrf.mxu0
    %v692 = vpop.f32.mrf.mxu0
    %v693 = vadd.f32 %v589, %v692
    %v694 = vpop.f32.mrf.mxu0
    %695 = vmatprep.mubr.bf16.mxu0 0
    %696 = vmatmul.mubr.bf16.gmra.mxu0 %v613
    %v697 = vpop.f32.mrf.mxu0
    %v698 = vadd.f32 %v589, %v697
    %v699 = vpop.f32.mrf.mxu0
    %v700 = vpop.f32.mrf.mxu0
    %v701 = vadd.f32 %v589, %v700
    %v702 = vpop.f32.mrf.mxu0
    %703 = vmatprep.mubr.bf16.mxu0 0
    %704 = vmatmul.mubr.bf16.gmra.mxu0 %v616
    %v705 = vpop.f32.mrf.mxu0
    %v706 = vadd.f32 %v589, %v705
    %v707 = vpop.f32.mrf.mxu0
    %v708 = vpop.f32.mrf.mxu0
    %v709 = vadd.f32 %v589, %v708
    %v710 = vpop.f32.mrf.mxu0
    %711 = vmatprep.mubr.bf16.mxu0 0
    %712 = vmatmul.mubr.bf16.gmra.mxu0 %v619
    %v713 = vpop.f32.mrf.mxu0
    %v714 = vadd.f32 %v589, %v713
    %v715 = vpop.f32.mrf.mxu0
    %v716 = vpop.f32.mrf.mxu0
    %v717 = vadd.f32 %v589, %v716
    %v718 = vpop.f32.mrf.mxu0
    %719 = vmatprep.mubr.bf16.mxu0 0
    %720 = vmatmul.mubr.bf16.gmra.mxu0 %v622
    %v721 = vpop.f32.mrf.mxu0
    %v722 = vadd.f32 %v589, %v721
    %v723 = vpop.f32.mrf.mxu0
    %v724 = vpop.f32.mrf.mxu0
    %v725 = vadd.f32 %v589, %v724
    %v726 = vpop.f32.mrf.mxu0
    %727 = vmatprep.mubr.bf16.mxu0 0
    %728 = vmatmul.mubr.bf16.gmra.mxu0 %v625
    %v729 = vpop.f32.mrf.mxu0
    %v730 = vadd.f32 %v589, %v729
    %v731 = vpop.f32.mrf.mxu0
    %v732 = vpop.f32.mrf.mxu0
    %v733 = vadd.f32 %v589, %v732
    %v734 = vpop.f32.mrf.mxu0
    %735 = vmatprep.mubr.bf16.mxu0 0
    %736 = vmatmul.mubr.bf16.gmra.mxu0 %v628
    %v737 = vpop.f32.mrf.mxu0
    %v738 = vadd.f32 %v589, %v737
    %v739 = vpop.f32.mrf.mxu0
    %v740 = vpop.f32.mrf.mxu0
    %v741 = vadd.f32 %v589, %v740
    %v742 = vpop.f32.mrf.mxu0
    %743 = vmatprep.mubr.bf16.mxu0 0
    %744 = vmatmul.mubr.bf16.gmra.mxu0 %v631
    %v745 = vpop.f32.mrf.mxu0
    %v746 = vadd.f32 %v589, %v745
    %v747 = vpop.f32.mrf.mxu0
    %v748 = vpop.f32.mrf.mxu0
    %v749 = vadd.f32 %v589, %v748
    %v750 = vpop.f32.mrf.mxu0
    %751 = vmatprep.mubr.bf16.mxu0 0
    %752 = vmatmul.mubr.bf16.gmra.mxu0 %v634
    %v753 = vpop.f32.mrf.mxu0
    %v754 = vadd.f32 %v589, %v753
    %v755 = vpop.f32.mrf.mxu0
    %v756 = vpop.f32.mrf.mxu0
    %v757 = vadd.f32 %v589, %v756
    %v758 = vpop.f32.mrf.mxu0
    %759 = vmatprep.mubr.bf16.mxu0 0
    %760 = vmatmul.mubr.bf16.gmra.mxu0 %v637
    %v761 = vpop.f32.mrf.mxu0
    %v762 = vadd.f32 %v589, %v761
    %v763 = vpop.f32.mrf.mxu0
    %v764 = vpop.f32.mrf.mxu0
    %v765 = vadd.f32 %v589, %v764
    %v766 = vpop.f32.mrf.mxu0
    %767 = vdwg.mxu0
    %v768 = vmax.f32 %v674, 0.0
    %v769 = vmax.f32 %v677, 0.0
    %v770 = vmax.f32 %v682, 0.0
    %v771 = vmax.f32 %v685, 0.0
    %v772 = vmax.f32 %v690, 0.0
    %v773 = vmax.f32 %v693, 0.0
    %v774 = vmax.f32 %v698, 0.0
    %v775 = vmax.f32 %v701, 0.0
    %v776 = vmax.f32 %v706, 0.0
    %v777 = vmax.f32 %v709, 0.0
    %v778 = vmax.f32 %v714, 0.0
    %v779 = vmax.f32 %v717, 0.0
    %v780 = vmax.f32 %v722, 0.0
    %v781 = vmax.f32 %v725, 0.0
    %v782 = vmax.f32 %v730, 0.0
    %v783 = vmax.f32 %v733, 0.0
    %v784 = vmax.f32 %v738, 0.0
    %v785 = vmax.f32 %v741, 0.0
    %v786 = vmax.f32 %v746, 0.0
    %v787 = vmax.f32 %v749, 0.0
    %v788 = vmax.f32 %v754, 0.0
    %v789 = vmax.f32 %v757, 0.0
    %v790 = vmax.f32 %v762, 0.0
    %v791 = vmax.f32 %v765, 0.0
    %v792 = vpack.c.bf16 %v769, %v768
    %v793 = vpack.c.bf16 %v771, %v770
    %v794 = vpack.c.bf16 %v773, %v772
    %v795 = vpack.c.bf16 %v775, %v774
    %v796 = vpack.c.bf16 %v777, %v776
    %v797 = vpack.c.bf16 %v779, %v778
    %v798 = vpack.c.bf16 %v781, %v780
    %v799 = vpack.c.bf16 %v783, %v782
    %v800 = vpack.c.bf16 %v785, %v784
    %v801 = vpack.c.bf16 %v787, %v786
    %v802 = vpack.c.bf16 %v789, %v788
    %v803 = vpack.c.bf16 %v791, %v790
    %v804 = vld [vmem:[%s11] sm:$0xf]
    %v805 = vld [vmem:[%s11 + $0x4] sm:$0xf]
    %v806 = vld [vmem:[%s11 + $0x8] sm:$0xf]
    %v807 = vld [vmem:[%s11 + $0xc] sm:$0xf]
    %v808 = vld [vmem:[%s11 + $0x10] sm:$0xf]
    %v809 = vld [vmem:[%s11 + $0x14] sm:$0xf]
    %v810 = vld [vmem:[%s11 + $0x18] sm:$0xf]
    %v811 = vld [vmem:[%s11 + $0x1c] sm:$0xf]
    %v812 = vld [vmem:[%s11 + $0x20] sm:$0xf]
    %v813 = vld [vmem:[%s11 + $0x24] sm:$0xf]
    %v814 = vld [vmem:[%s11 + $0x28] sm:$0xf]
    %v815 = vld [vmem:[%s11 + $0x2c] sm:$0xf]
    %v816 = vld [vmem:[%s11 + $0x30] sm:$0xf]
    %v817 = vld [vmem:[%s11 + $0x34] sm:$0xf]
    %v818 = vld [vmem:[%s11 + $0x38] sm:$0xf]
    %v819 = vld [vmem:[%s11 + $0x3c] sm:$0xf]
    %v820 = vld [vmem:[%s12] sm:$0x1]
    %v822 = vlaneseq
    %v823 = vshrl.u32 %v822, 7
    %v824 = vsub.s32 0, %v823
    %v825 = vrot.slane %v820, %v824
    %v843 = vunpack.c.l.b16 %v804
    %v844 = vunpack.c.l.b16 %v805
    %v845 = vunpack.c.l.b16 %v806
    %v846 = vunpack.c.l.b16 %v807
    %v847 = vunpack.c.l.b16 %v808
    %v848 = vunpack.c.l.b16 %v809
    %v849 = vunpack.c.l.b16 %v810
    %v850 = vunpack.c.l.b16 %v811
    %v851 = vunpack.c.l.b16 %v812
    %v852 = vunpack.c.l.b16 %v813
    %v853 = vunpack.c.l.b16 %v814
    %v854 = vunpack.c.l.b16 %v815
    %v855 = vunpack.c.l.b16 %v816
    %v856 = vunpack.c.l.b16 %v817
    %v857 = vunpack.c.l.b16 %v818
    %v858 = vunpack.c.l.b16 %v819
    %v859 = vpack.c.b16 %v844, %v843
    %v860 = vpack.c.b16 %v846, %v845
    %v861 = vpack.c.b16 %v848, %v847
    %v862 = vpack.c.b16 %v850, %v849
    %v863 = vpack.c.b16 %v852, %v851
    %v864 = vpack.c.b16 %v854, %v853
    %v865 = vpack.c.b16 %v856, %v855
    %v866 = vpack.c.b16 %v858, %v857
    %875 = vmatprep.subr.bf16.mxu0 0
    %876 = vmatpush1.bf16.msra.mxu0 %v866
    %877 = vmatprep.subr.bf16.mxu0 0
    %878 = vmatpush1.bf16.msra.mxu0 %v865
    %879 = vmatprep.subr.bf16.mxu0 0
    %880 = vmatpush1.bf16.msra.mxu0 %v864
    %881 = vmatprep.subr.bf16.mxu0 0
    %882 = vmatpush1.bf16.msra.mxu0 %v863
    %883 = vmatprep.subr.bf16.mxu0 0
    %884 = vmatpush1.bf16.msra.mxu0 %v862
    %885 = vmatprep.subr.bf16.mxu0 0
    %886 = vmatpush1.bf16.msra.mxu0 %v861
    %887 = vmatprep.subr.bf16.mxu0 0
    %888 = vmatpush1.bf16.msra.mxu0 %v860
    %889 = vmatprep.subr.bf16.mxu0 0
    %890 = vmatpush1.bf16.msra.mxu0 %v859
    %891 = vmatprep.subr.bf16.mxu0 0
    %892 = vmatpush2.bf16.msra.mxu0 0
    %893 = vmatprep.subr.bf16.mxu0 0
    %894 = vmatpush2.bf16.msra.mxu0 0
    %895 = vmatprep.subr.bf16.mxu0 0
    %896 = vmatpush2.bf16.msra.mxu0 0
    %897 = vmatprep.subr.bf16.mxu0 0
    %898 = vmatpush2.bf16.msra.mxu0 0
    %899 = vmatprep.subr.bf16.mxu0 0
    %900 = vmatpush2.bf16.msra.mxu0 0
    %901 = vmatprep.subr.bf16.mxu0 0
    %902 = vmatpush2.bf16.msra.mxu0 0
    %903 = vmatprep.subr.bf16.mxu0 0
    %904 = vmatpush2.bf16.msra.mxu0 0
    %905 = vmatprep.subr.bf16.mxu0 0
    %906 = vmatpush2.bf16.msra.mxu0 0
    %907 = vmatprep.mubr.bf16.mxu0 0
    %908 = vmatmul.mubr.bf16.gmra.mxu0 %v792
    %v909 = vpop.f32.mrf.mxu0
    %v910 = vadd.f32 %v825, %v909
    %v911 = vpop.f32.mrf.mxu0
    %v912 = vpop.f32.mrf.mxu0
    %v913 = vadd.f32 %v825, %v912
    %v914 = vpop.f32.mrf.mxu0
    %915 = vmatprep.mubr.bf16.mxu0 0
    %916 = vmatmul.mubr.bf16.gmra.mxu0 %v793
    %v917 = vpop.f32.mrf.mxu0
    %v918 = vadd.f32 %v825, %v917
    %v919 = vpop.f32.mrf.mxu0
    %v920 = vpop.f32.mrf.mxu0
    %v921 = vadd.f32 %v825, %v920
    %v922 = vpop.f32.mrf.mxu0
    %923 = vmatprep.mubr.bf16.mxu0 0
    %924 = vmatmul.mubr.bf16.gmra.mxu0 %v794
    %v925 = vpop.f32.mrf.mxu0
    %v926 = vadd.f32 %v825, %v925
    %v927 = vpop.f32.mrf.mxu0
    %v928 = vpop.f32.mrf.mxu0
    %v929 = vadd.f32 %v825, %v928
    %v930 = vpop.f32.mrf.mxu0
    %931 = vmatprep.mubr.bf16.mxu0 0
    %932 = vmatmul.mubr.bf16.gmra.mxu0 %v795
    %v933 = vpop.f32.mrf.mxu0
    %v934 = vadd.f32 %v825, %v933
    %v935 = vpop.f32.mrf.mxu0
    %v936 = vpop.f32.mrf.mxu0
    %v937 = vadd.f32 %v825, %v936
    %v938 = vpop.f32.mrf.mxu0
    %939 = vmatprep.mubr.bf16.mxu0 0
    %940 = vmatmul.mubr.bf16.gmra.mxu0 %v796
    %v941 = vpop.f32.mrf.mxu0
    %v942 = vadd.f32 %v825, %v941
    %v943 = vpop.f32.mrf.mxu0
    %v944 = vpop.f32.mrf.mxu0
    %v945 = vadd.f32 %v825, %v944
    %v946 = vpop.f32.mrf.mxu0
    %947 = vmatprep.mubr.bf16.mxu0 0
    %948 = vmatmul.mubr.bf16.gmra.mxu0 %v797
    %v949 = vpop.f32.mrf.mxu0
    %v950 = vadd.f32 %v825, %v949
    %v951 = vpop.f32.mrf.mxu0
    %v952 = vpop.f32.mrf.mxu0
    %v953 = vadd.f32 %v825, %v952
    %v954 = vpop.f32.mrf.mxu0
    %955 = vmatprep.mubr.bf16.mxu0 0
    %956 = vmatmul.mubr.bf16.gmra.mxu0 %v798
    %v957 = vpop.f32.mrf.mxu0
    %v958 = vadd.f32 %v825, %v957
    %v959 = vpop.f32.mrf.mxu0
    %v960 = vpop.f32.mrf.mxu0
    %v961 = vadd.f32 %v825, %v960
    %v962 = vpop.f32.mrf.mxu0
    %963 = vmatprep.mubr.bf16.mxu0 0
    %964 = vmatmul.mubr.bf16.gmra.mxu0 %v799
    %v965 = vpop.f32.mrf.mxu0
    %v966 = vadd.f32 %v825, %v965
    %v967 = vpop.f32.mrf.mxu0
    %v968 = vpop.f32.mrf.mxu0
    %v969 = vadd.f32 %v825, %v968
    %v970 = vpop.f32.mrf.mxu0
    %971 = vmatprep.mubr.bf16.mxu0 0
    %972 = vmatmul.mubr.bf16.gmra.mxu0 %v800
    %v973 = vpop.f32.mrf.mxu0
    %v974 = vadd.f32 %v825, %v973
    %v975 = vpop.f32.mrf.mxu0
    %v976 = vpop.f32.mrf.mxu0
    %v977 = vadd.f32 %v825, %v976
    %v978 = vpop.f32.mrf.mxu0
    %979 = vmatprep.mubr.bf16.mxu0 0
    %980 = vmatmul.mubr.bf16.gmra.mxu0 %v801
    %v981 = vpop.f32.mrf.mxu0
    %v982 = vadd.f32 %v825, %v981
    %v983 = vpop.f32.mrf.mxu0
    %v984 = vpop.f32.mrf.mxu0
    %v985 = vadd.f32 %v825, %v984
    %v986 = vpop.f32.mrf.mxu0
    %987 = vmatprep.mubr.bf16.mxu0 0
    %988 = vmatmul.mubr.bf16.gmra.mxu0 %v802
    %v989 = vpop.f32.mrf.mxu0
    %v990 = vadd.f32 %v825, %v989
    %v991 = vpop.f32.mrf.mxu0
    %v992 = vpop.f32.mrf.mxu0
    %v993 = vadd.f32 %v825, %v992
    %v994 = vpop.f32.mrf.mxu0
    %995 = vmatprep.mubr.bf16.mxu0 0
    %996 = vmatmul.mubr.bf16.gmra.mxu0 %v803
    %v997 = vpop.f32.mrf.mxu0
    %v998 = vadd.f32 %v825, %v997
    %v999 = vpop.f32.mrf.mxu0
    %v1000 = vpop.f32.mrf.mxu0
    %v1001 = vadd.f32 %v825, %v1000
    %v1002 = vpop.f32.mrf.mxu0
    %1003 = vdwg.mxu0
    %v1004 = vmax.f32 %v910, 0.0
    %v1005 = vmax.f32 %v913, 0.0
    %v1006 = vmax.f32 %v918, 0.0
    %v1007 = vmax.f32 %v921, 0.0
    %v1008 = vmax.f32 %v926, 0.0
    %v1009 = vmax.f32 %v929, 0.0
    %v1010 = vmax.f32 %v934, 0.0
    %v1011 = vmax.f32 %v937, 0.0
    %v1012 = vmax.f32 %v942, 0.0
    %v1013 = vmax.f32 %v945, 0.0
    %v1014 = vmax.f32 %v950, 0.0
    %v1015 = vmax.f32 %v953, 0.0
    %v1016 = vmax.f32 %v958, 0.0
    %v1017 = vmax.f32 %v961, 0.0
    %v1018 = vmax.f32 %v966, 0.0
    %v1019 = vmax.f32 %v969, 0.0
    %v1020 = vmax.f32 %v974, 0.0
    %v1021 = vmax.f32 %v977, 0.0
    %v1022 = vmax.f32 %v982, 0.0
    %v1023 = vmax.f32 %v985, 0.0
    %v1024 = vmax.f32 %v990, 0.0
    %v1025 = vmax.f32 %v993, 0.0
    %v1026 = vmax.f32 %v998, 0.0
    %v1027 = vmax.f32 %v1001, 0.0
    %v1028 = vpack.c.bf16 %v1005, %v1004
    %v1029 = vpack.c.bf16 %v1007, %v1006
    %v1030 = vpack.c.bf16 %v1009, %v1008
    %v1031 = vpack.c.bf16 %v1011, %v1010
    %v1032 = vpack.c.bf16 %v1013, %v1012
    %v1033 = vpack.c.bf16 %v1015, %v1014
    %v1034 = vpack.c.bf16 %v1017, %v1016
    %v1035 = vpack.c.bf16 %v1019, %v1018
    %v1036 = vpack.c.bf16 %v1021, %v1020
    %v1037 = vpack.c.bf16 %v1023, %v1022
    %v1038 = vpack.c.bf16 %v1025, %v1024
    %v1039 = vpack.c.bf16 %v1027, %v1026
    %v1040 = vld [vmem:[%s13] sm:$0xf]
    %v1041 = vld [vmem:[%s13 + $0x4] sm:$0xf]
    %v1042 = vld [vmem:[%s13 + $0x8] sm:$0xf]
    %v1043 = vld [vmem:[%s13 + $0xc] sm:$0xf]
    %v1044 = vld [vmem:[%s13 + $0x10] sm:$0xf]
    %v1045 = vld [vmem:[%s13 + $0x14] sm:$0xf]
    %v1046 = vld [vmem:[%s13 + $0x18] sm:$0xf]
    %v1047 = vld [vmem:[%s13 + $0x1c] sm:$0xf]
    %v1048 = vld [vmem:[%s13 + $0x20] sm:$0xf]
    %v1049 = vld [vmem:[%s13 + $0x24] sm:$0xf]
    %v1050 = vld [vmem:[%s13 + $0x28] sm:$0xf]
    %v1051 = vld [vmem:[%s13 + $0x2c] sm:$0xf]
    %v1052 = vld [vmem:[%s13 + $0x30] sm:$0xf]
    %v1053 = vld [vmem:[%s13 + $0x34] sm:$0xf]
    %v1054 = vld [vmem:[%s13 + $0x38] sm:$0xf]
    %v1055 = vld [vmem:[%s13 + $0x3c] sm:$0xf]
    %v1056 = vld [vmem:[%s14] sm:$0x1]
    %v1058 = vlaneseq
    %v1059 = vshrl.u32 %v1058, 7
    %v1060 = vsub.s32 0, %v1059
    %v1061 = vrot.slane %v1056, %v1060
    %v1079 = vunpack.c.l.b16 %v1040
    %v1080 = vunpack.c.l.b16 %v1041
    %v1081 = vunpack.c.l.b16 %v1042
    %v1082 = vunpack.c.l.b16 %v1043
    %v1083 = vunpack.c.l.b16 %v1044
    %v1084 = vunpack.c.l.b16 %v1045
    %v1085 = vunpack.c.l.b16 %v1046
    %v1086 = vunpack.c.l.b16 %v1047
    %v1087 = vunpack.c.l.b16 %v1048
    %v1088 = vunpack.c.l.b16 %v1049
    %v1089 = vunpack.c.l.b16 %v1050
    %v1090 = vunpack.c.l.b16 %v1051
    %v1091 = vunpack.c.l.b16 %v1052
    %v1092 = vunpack.c.l.b16 %v1053
    %v1093 = vunpack.c.l.b16 %v1054
    %v1094 = vunpack.c.l.b16 %v1055
    %v1095 = vpack.c.b16 %v1080, %v1079
    %v1096 = vpack.c.b16 %v1082, %v1081
    %v1097 = vpack.c.b16 %v1084, %v1083
    %v1098 = vpack.c.b16 %v1086, %v1085
    %v1099 = vpack.c.b16 %v1088, %v1087
    %v1100 = vpack.c.b16 %v1090, %v1089
    %v1101 = vpack.c.b16 %v1092, %v1091
    %v1102 = vpack.c.b16 %v1094, %v1093
    %1111 = vmatprep.subr.bf16.mxu0 0
    %1112 = vmatpush1.bf16.msra.mxu0 %v1102
    %1113 = vmatprep.subr.bf16.mxu0 0
    %1114 = vmatpush1.bf16.msra.mxu0 %v1101
    %1115 = vmatprep.subr.bf16.mxu0 0
    %1116 = vmatpush1.bf16.msra.mxu0 %v1100
    %1117 = vmatprep.subr.bf16.mxu0 0
    %1118 = vmatpush1.bf16.msra.mxu0 %v1099
    %1119 = vmatprep.subr.bf16.mxu0 0
    %1120 = vmatpush1.bf16.msra.mxu0 %v1098
    %1121 = vmatprep.subr.bf16.mxu0 0
    %1122 = vmatpush1.bf16.msra.mxu0 %v1097
    %1123 = vmatprep.subr.bf16.mxu0 0
    %1124 = vmatpush1.bf16.msra.mxu0 %v1096
    %1125 = vmatprep.subr.bf16.mxu0 0
    %1126 = vmatpush1.bf16.msra.mxu0 %v1095
    %1127 = vmatprep.subr.bf16.mxu0 0
    %1128 = vmatpush2.bf16.msra.mxu0 0
    %1129 = vmatprep.subr.bf16.mxu0 0
    %1130 = vmatpush2.bf16.msra.mxu0 0
    %1131 = vmatprep.subr.bf16.mxu0 0
    %1132 = vmatpush2.bf16.msra.mxu0 0
    %1133 = vmatprep.subr.bf16.mxu0 0
    %1134 = vmatpush2.bf16.msra.mxu0 0
    %1135 = vmatprep.subr.bf16.mxu0 0
    %1136 = vmatpush2.bf16.msra.mxu0 0
    %1137 = vmatprep.subr.bf16.mxu0 0
    %1138 = vmatpush2.bf16.msra.mxu0 0
    %1139 = vmatprep.subr.bf16.mxu0 0
    %1140 = vmatpush2.bf16.msra.mxu0 0
    %1141 = vmatprep.subr.bf16.mxu0 0
    %1142 = vmatpush2.bf16.msra.mxu0 0
    %1143 = vmatprep.mubr.bf16.mxu0 0
    %1144 = vmatmul.mubr.bf16.gmra.mxu0 %v1028
    %v1145 = vpop.f32.mrf.mxu0
    %v1146 = vadd.f32 %v1061, %v1145
    %v1147 = vpop.f32.mrf.mxu0
    %v1148 = vpop.f32.mrf.mxu0
    %v1149 = vadd.f32 %v1061, %v1148
    %v1150 = vpop.f32.mrf.mxu0
    %1151 = vmatprep.mubr.bf16.mxu0 0
    %1152 = vmatmul.mubr.bf16.gmra.mxu0 %v1029
    %v1153 = vpop.f32.mrf.mxu0
    %v1154 = vadd.f32 %v1061, %v1153
    %v1155 = vpop.f32.mrf.mxu0
    %v1156 = vpop.f32.mrf.mxu0
    %v1157 = vadd.f32 %v1061, %v1156
    %v1158 = vpop.f32.mrf.mxu0
    %1159 = vmatprep.mubr.bf16.mxu0 0
    %1160 = vmatmul.mubr.bf16.gmra.mxu0 %v1030
    %v1161 = vpop.f32.mrf.mxu0
    %v1162 = vadd.f32 %v1061, %v1161
    %v1163 = vpop.f32.mrf.mxu0
    %v1164 = vpop.f32.mrf.mxu0
    %v1165 = vadd.f32 %v1061, %v1164
    %v1166 = vpop.f32.mrf.mxu0
    %1167 = vmatprep.mubr.bf16.mxu0 0
    %1168 = vmatmul.mubr.bf16.gmra.mxu0 %v1031
    %v1169 = vpop.f32.mrf.mxu0
    %v1170 = vadd.f32 %v1061, %v1169
    %v1171 = vpop.f32.mrf.mxu0
    %v1172 = vpop.f32.mrf.mxu0
    %v1173 = vadd.f32 %v1061, %v1172
    %v1174 = vpop.f32.mrf.mxu0
    %1175 = vmatprep.mubr.bf16.mxu0 0
    %1176 = vmatmul.mubr.bf16.gmra.mxu0 %v1032
    %v1177 = vpop.f32.mrf.mxu0
    %v1178 = vadd.f32 %v1061, %v1177
    %v1179 = vpop.f32.mrf.mxu0
    %v1180 = vpop.f32.mrf.mxu0
    %v1181 = vadd.f32 %v1061, %v1180
    %v1182 = vpop.f32.mrf.mxu0
    %1183 = vmatprep.mubr.bf16.mxu0 0
    %1184 = vmatmul.mubr.bf16.gmra.mxu0 %v1033
    %v1185 = vpop.f32.mrf.mxu0
    %v1186 = vadd.f32 %v1061, %v1185
    %v1187 = vpop.f32.mrf.mxu0
    %v1188 = vpop.f32.mrf.mxu0
    %v1189 = vadd.f32 %v1061, %v1188
    %v1190 = vpop.f32.mrf.mxu0
    %1191 = vmatprep.mubr.bf16.mxu0 0
    %1192 = vmatmul.mubr.bf16.gmra.mxu0 %v1034
    %v1193 = vpop.f32.mrf.mxu0
    %v1194 = vadd.f32 %v1061, %v1193
    %v1195 = vpop.f32.mrf.mxu0
    %v1196 = vpop.f32.mrf.mxu0
    %v1197 = vadd.f32 %v1061, %v1196
    %v1198 = vpop.f32.mrf.mxu0
    %1199 = vmatprep.mubr.bf16.mxu0 0
    %1200 = vmatmul.mubr.bf16.gmra.mxu0 %v1035
    %v1201 = vpop.f32.mrf.mxu0
    %v1202 = vadd.f32 %v1061, %v1201
    %v1203 = vpop.f32.mrf.mxu0
    %v1204 = vpop.f32.mrf.mxu0
    %v1205 = vadd.f32 %v1061, %v1204
    %v1206 = vpop.f32.mrf.mxu0
    %1207 = vmatprep.mubr.bf16.mxu0 0
    %1208 = vmatmul.mubr.bf16.gmra.mxu0 %v1036
    %v1209 = vpop.f32.mrf.mxu0
    %v1210 = vadd.f32 %v1061, %v1209
    %v1211 = vpop.f32.mrf.mxu0
    %v1212 = vpop.f32.mrf.mxu0
    %v1213 = vadd.f32 %v1061, %v1212
    %v1214 = vpop.f32.mrf.mxu0
    %1215 = vmatprep.mubr.bf16.mxu0 0
    %1216 = vmatmul.mubr.bf16.gmra.mxu0 %v1037
    %v1217 = vpop.f32.mrf.mxu0
    %v1218 = vadd.f32 %v1061, %v1217
    %v1219 = vpop.f32.mrf.mxu0
    %v1220 = vpop.f32.mrf.mxu0
    %v1221 = vadd.f32 %v1061, %v1220
    %v1222 = vpop.f32.mrf.mxu0
    %1223 = vmatprep.mubr.bf16.mxu0 0
    %1224 = vmatmul.mubr.bf16.gmra.mxu0 %v1038
    %v1225 = vpop.f32.mrf.mxu0
    %v1226 = vadd.f32 %v1061, %v1225
    %v1227 = vpop.f32.mrf.mxu0
    %v1228 = vpop.f32.mrf.mxu0
    %v1229 = vadd.f32 %v1061, %v1228
    %v1230 = vpop.f32.mrf.mxu0
    %1231 = vmatprep.mubr.bf16.mxu0 0
    %1232 = vmatmul.mubr.bf16.gmra.mxu0 %v1039
    %v1233 = vpop.f32.mrf.mxu0
    %v1234 = vadd.f32 %v1061, %v1233
    %v1235 = vpop.f32.mrf.mxu0
    %v1236 = vpop.f32.mrf.mxu0
    %v1237 = vadd.f32 %v1061, %v1236
    %v1238 = vpop.f32.mrf.mxu0
    %1239 = vdwg.mxu0
    %1240 = vst [vmem:[#allocation10] sm:$0xff] %v1146
    %1241 = vst [vmem:[#allocation10 + $0x8] sm:$0xff] %v1149
    %1242 = vst [vmem:[#allocation10 + $0x10] sm:$0xff] %v1154
    %1243 = vst [vmem:[#allocation10 + $0x18] sm:$0xff] %v1157
    %1244 = vst [vmem:[#allocation10 + $0x20] sm:$0xff] %v1162
    %1245 = vst [vmem:[#allocation10 + $0x28] sm:$0xff] %v1165
    %1246 = vst [vmem:[#allocation10 + $0x30] sm:$0xff] %v1170
    %1247 = vst [vmem:[#allocation10 + $0x38] sm:$0xff] %v1173
    %1248 = vst [vmem:[#allocation11] sm:$0xff] %v1178
    %1249 = vst [vmem:[#allocation11 + $0x8] sm:$0xff] %v1181
    %1250 = vst [vmem:[#allocation11 + $0x10] sm:$0xff] %v1186
    %1251 = vst [vmem:[#allocation11 + $0x18] sm:$0xff] %v1189
    %1252 = vst [vmem:[#allocation11 + $0x20] sm:$0xff] %v1194
    %1253 = vst [vmem:[#allocation11 + $0x28] sm:$0xff] %v1197
    %1254 = vst [vmem:[#allocation11 + $0x30] sm:$0xff] %v1202
    %1255 = vst [vmem:[#allocation11 + $0x38] sm:$0xff] %v1205
    %1256 = vst [vmem:[#allocation13] sm:$0xff] %v1210
    %1257 = vst [vmem:[#allocation13 + $0x8] sm:$0xff] %v1213
    %1258 = vst [vmem:[#allocation13 + $0x10] sm:$0xff] %v1218
    %1259 = vst [vmem:[#allocation13 + $0x18] sm:$0xff] %v1221
    %1260 = vst [vmem:[#allocation13 + $0x20] sm:$0xff] %v1226
    %1261 = vst [vmem:[#allocation13 + $0x28] sm:$0xff] %v1229
    %1262 = vst [vmem:[#allocation13 + $0x30] sm:$0xff] %v1234
    %1263 = vst [vmem:[#allocation13 + $0x38] sm:$0xff] %v1237
    %v1264 = vsub.f32 %v1146, %v1178
    %v1265 = vsub.f32 %v1149, %v1181
    %v1266 = vsub.f32 %v1154, %v1186
    %v1267 = vsub.f32 %v1157, %v1189
    %v1268 = vsub.f32 %v1162, %v1194
    %v1269 = vsub.f32 %v1165, %v1197
    %v1270 = vsub.f32 %v1170, %v1202
    %v1271 = vsub.f32 %v1173, %v1205
    %v1272 = vadd.f32 %v1264, 1e-06
    %v1273 = vadd.f32 %v1265, 1e-06
    %v1274 = vadd.f32 %v1266, 1e-06
    %v1275 = vadd.f32 %v1267, 1e-06
    %v1276 = vadd.f32 %v1268, 1e-06
    %v1277 = vadd.f32 %v1269, 1e-06
    %v1278 = vadd.f32 %v1270, 1e-06
    %v1279 = vadd.f32 %v1271, 1e-06
    %1280 = vxpose.xlu0.b32.start [1/16] %v1272, 128
    %1281 = vxpose.xlu0.b32.cont [2/16] %v1273, 128
    %1282 = vxpose.xlu0.b32.cont [3/16] %v1274, 128
    %1283 = vxpose.xlu0.b32.cont [4/16] %v1275, 128
    %1284 = vxpose.xlu0.b32.cont [5/16] %v1276, 128
    %1285 = vxpose.xlu0.b32.cont [6/16] %v1277, 128
    %1286 = vxpose.xlu0.b32.cont [7/16] %v1278, 128
    %1287 = vxpose.xlu0.b32.cont [8/16] %v1279, 128
    %1288 = vxpose.xlu0.b32.cont [9/16] 0.0, 128
    %1289 = vxpose.xlu0.b32.cont [10/16] 0.0, 128
    %1290 = vxpose.xlu0.b32.cont [11/16] 0.0, 128
    %1291 = vxpose.xlu0.b32.cont [12/16] 0.0, 128
    %1292 = vxpose.xlu0.b32.cont [13/16] 0.0, 128
    %1293 = vxpose.xlu0.b32.cont [14/16] 0.0, 128
    %1294 = vxpose.xlu0.b32.cont [15/16] 0.0, 128
    %1295 = vxpose.xlu0.b32.end [16/16] 0.0, 128
    %v1296 = vpop.trf.xlu0
    %v1297 = vpop.trf.xlu0
    %v1298 = vpop.trf.xlu0
    %v1299 = vpop.trf.xlu0
    %v1300 = vpop.trf.xlu0
    %v1301 = vpop.trf.xlu0
    %v1302 = vpop.trf.xlu0
    %v1303 = vpop.trf.xlu0
    %v1304 = vpop.trf.xlu0
    %v1305 = vpop.trf.xlu0
    %v1306 = vpop.trf.xlu0
    %v1307 = vpop.trf.xlu0
    %v1308 = vpop.trf.xlu0
    %v1309 = vpop.trf.xlu0
    %v1310 = vpop.trf.xlu0
    %v1311 = vpop.trf.xlu0
    %v1312 = vmul.f32 %v1296, %v1296
    %v1313 = vmul.f32 %v1297, %v1297
    %v1314 = vmul.f32 %v1298, %v1298
    %v1315 = vmul.f32 %v1299, %v1299
    %v1316 = vmul.f32 %v1300, %v1300
    %v1317 = vmul.f32 %v1301, %v1301
    %v1318 = vmul.f32 %v1302, %v1302
    %v1319 = vmul.f32 %v1303, %v1303
    %v1320 = vmul.f32 %v1304, %v1304
    %v1321 = vmul.f32 %v1305, %v1305
    %v1322 = vmul.f32 %v1306, %v1306
    %v1323 = vmul.f32 %v1307, %v1307
    %v1324 = vmul.f32 %v1308, %v1308
    %v1325 = vmul.f32 %v1309, %v1309
    %v1326 = vmul.f32 %v1310, %v1310
    %v1327 = vmul.f32 %v1311, %v1311
    %vm1328 = vcmask 523264
    %v1329 = vsel %vm1328, %v1312, 0.0
    %v1330 = vsel %vm1328, %v1313, 0.0
    %v1331 = vadd.f32 %v1329, %v1330
    %v1332 = vsel %vm1328, %v1314, 0.0
    %v1333 = vadd.f32 %v1331, %v1332
    %v1334 = vsel %vm1328, %v1315, 0.0
    %v1335 = vadd.f32 %v1333, %v1334
    %v1336 = vsel %vm1328, %v1316, 0.0
    %v1337 = vadd.f32 %v1335, %v1336
    %v1338 = vsel %vm1328, %v1317, 0.0
    %v1339 = vadd.f32 %v1337, %v1338
    %v1340 = vsel %vm1328, %v1318, 0.0
    %v1341 = vadd.f32 %v1339, %v1340
    %v1342 = vsel %vm1328, %v1319, 0.0
    %v1343 = vadd.f32 %v1341, %v1342
    %v1344 = vsel %vm1328, %v1320, 0.0
    %v1345 = vadd.f32 %v1343, %v1344
    %v1346 = vsel %vm1328, %v1321, 0.0
    %v1347 = vadd.f32 %v1345, %v1346
    %v1348 = vsel %vm1328, %v1322, 0.0
    %v1349 = vadd.f32 %v1347, %v1348
    %v1350 = vsel %vm1328, %v1323, 0.0
    %v1351 = vadd.f32 %v1349, %v1350
    %v1352 = vsel %vm1328, %v1324, 0.0
    %v1353 = vadd.f32 %v1351, %v1352
    %v1354 = vsel %vm1328, %v1325, 0.0
    %v1355 = vadd.f32 %v1353, %v1354
    %v1356 = vsel %vm1328, %v1326, 0.0
    %v1357 = vadd.f32 %v1355, %v1356
    %v1358 = vsel %vm1328, %v1327, 0.0
    %v1359 = vadd.f32 %v1357, %v1358
    %v1360 = vrot.slane %v1359, 4
    %v1361 = vadd.f32 %v1359, %v1360
    %v1362 = vrot.slane %v1361, 2
    %v1363 = vadd.f32 %v1361, %v1362
    %v1364 = vrot.slane %v1363, 1
    %v1365 = vadd.f32 %v1363, %v1364
    %v1366 = vsub.f32 %v1365, 1.12e-10
    %v1367 = vmax.f32 %v1366, 0.0
    %v1368 = vrsqrt.pop %v1367
    %v1369 = vmul.f32 %v1367, %v1368
    %vm1370 = vcmp.eq.f32.partialorder %v1367, inf
    %v1371 = vsel %vm1370, %v1367, %v1369
    %vm1372 = vcmp.eq.f32.partialorder %v1367, 0.0
    %v1373 = vand.u32 %v1367, 2147483648
    %v1374 = vsel %vm1372, %v1373, %v1371
    %vm1375 = vcmask 516096
    %1376 = vst.msk [vmem:[#allocation7] sm:$0x1] %vm1375, %v1374
    %v1377 = vsub.f32 %v1146, %v1210
    %v1378 = vsub.f32 %v1149, %v1213
    %v1379 = vsub.f32 %v1154, %v1218
    %v1380 = vsub.f32 %v1157, %v1221
    %v1381 = vsub.f32 %v1162, %v1226
    %v1382 = vsub.f32 %v1165, %v1229
    %v1383 = vsub.f32 %v1170, %v1234
    %v1384 = vsub.f32 %v1173, %v1237
    %v1385 = vadd.f32 %v1377, 1e-06
    %v1386 = vadd.f32 %v1378, 1e-06
    %v1387 = vadd.f32 %v1379, 1e-06
    %v1388 = vadd.f32 %v1380, 1e-06
    %v1389 = vadd.f32 %v1381, 1e-06
    %v1390 = vadd.f32 %v1382, 1e-06
    %v1391 = vadd.f32 %v1383, 1e-06
    %v1392 = vadd.f32 %v1384, 1e-06
    %1393 = vxpose.xlu0.b32.start [1/16] %v1385, 128
    %1394 = vxpose.xlu0.b32.cont [2/16] %v1386, 128
    %1395 = vxpose.xlu0.b32.cont [3/16] %v1387, 128
    %1396 = vxpose.xlu0.b32.cont [4/16] %v1388, 128
    %1397 = vxpose.xlu0.b32.cont [5/16] %v1389, 128
    %1398 = vxpose.xlu0.b32.cont [6/16] %v1390, 128
    %1399 = vxpose.xlu0.b32.cont [7/16] %v1391, 128
    %1400 = vxpose.xlu0.b32.cont [8/16] %v1392, 128
    %1401 = vxpose.xlu0.b32.cont [9/16] 0.0, 128
    %1402 = vxpose.xlu0.b32.cont [10/16] 0.0, 128
    %1403 = vxpose.xlu0.b32.cont [11/16] 0.0, 128
    %1404 = vxpose.xlu0.b32.cont [12/16] 0.0, 128
    %1405 = vxpose.xlu0.b32.cont [13/16] 0.0, 128
    %1406 = vxpose.xlu0.b32.cont [14/16] 0.0, 128
    %1407 = vxpose.xlu0.b32.cont [15/16] 0.0, 128
    %1408 = vxpose.xlu0.b32.end [16/16] 0.0, 128
    %v1409 = vpop.trf.xlu0
    %v1410 = vpop.trf.xlu0
    %v1411 = vpop.trf.xlu0
    %v1412 = vpop.trf.xlu0
    %v1413 = vpop.trf.xlu0
    %v1414 = vpop.trf.xlu0
    %v1415 = vpop.trf.xlu0
    %v1416 = vpop.trf.xlu0
    %v1417 = vpop.trf.xlu0
    %v1418 = vpop.trf.xlu0
    %v1419 = vpop.trf.xlu0
    %v1420 = vpop.trf.xlu0
    %v1421 = vpop.trf.xlu0
    %v1422 = vpop.trf.xlu0
    %v1423 = vpop.trf.xlu0
    %v1424 = vpop.trf.xlu0
    %v1425 = vmul.f32 %v1409, %v1409
    %v1426 = vmul.f32 %v1410, %v1410
    %v1427 = vmul.f32 %v1411, %v1411
    %v1428 = vmul.f32 %v1412, %v1412
    %v1429 = vmul.f32 %v1413, %v1413
    %v1430 = vmul.f32 %v1414, %v1414
    %v1431 = vmul.f32 %v1415, %v1415
    %v1432 = vmul.f32 %v1416, %v1416
    %v1433 = vmul.f32 %v1417, %v1417
    %v1434 = vmul.f32 %v1418, %v1418
    %v1435 = vmul.f32 %v1419, %v1419
    %v1436 = vmul.f32 %v1420, %v1420
    %v1437 = vmul.f32 %v1421, %v1421
    %v1438 = vmul.f32 %v1422, %v1422
    %v1439 = vmul.f32 %v1423, %v1423
    %v1440 = vmul.f32 %v1424, %v1424
    %v1441 = vsel %vm1328, %v1425, 0.0
    %v1442 = vsel %vm1328, %v1426, 0.0
    %v1443 = vadd.f32 %v1441, %v1442
    %v1444 = vsel %vm1328, %v1427, 0.0
    %v1445 = vadd.f32 %v1443, %v1444
    %v1446 = vsel %vm1328, %v1428, 0.0
    %v1447 = vadd.f32 %v1445, %v1446
    %v1448 = vsel %vm1328, %v1429, 0.0
    %v1449 = vadd.f32 %v1447, %v1448
    %v1450 = vsel %vm1328, %v1430, 0.0
    %v1451 = vadd.f32 %v1449, %v1450
    %v1452 = vsel %vm1328, %v1431, 0.0
    %v1453 = vadd.f32 %v1451, %v1452
    %v1454 = vsel %vm1328, %v1432, 0.0
    %v1455 = vadd.f32 %v1453, %v1454
    %v1456 = vsel %vm1328, %v1433, 0.0
    %v1457 = vadd.f32 %v1455, %v1456
    %v1458 = vsel %vm1328, %v1434, 0.0
    %v1459 = vadd.f32 %v1457, %v1458
    %v1460 = vsel %vm1328, %v1435, 0.0
    %v1461 = vadd.f32 %v1459, %v1460
    %v1462 = vsel %vm1328, %v1436, 0.0
    %v1463 = vadd.f32 %v1461, %v1462
    %v1464 = vsel %vm1328, %v1437, 0.0
    %v1465 = vadd.f32 %v1463, %v1464
    %v1466 = vsel %vm1328, %v1438, 0.0
    %v1467 = vadd.f32 %v1465, %v1466
    %v1468 = vsel %vm1328, %v1439, 0.0
    %v1469 = vadd.f32 %v1467, %v1468
    %v1470 = vsel %vm1328, %v1440, 0.0
    %v1471 = vadd.f32 %v1469, %v1470
    %v1472 = vrot.slane %v1471, 4
    %v1473 = vadd.f32 %v1471, %v1472
    %v1474 = vrot.slane %v1473, 2
    %v1475 = vadd.f32 %v1473, %v1474
    %v1476 = vrot.slane %v1475, 1
    %v1477 = vadd.f32 %v1475, %v1476
    %v1478 = vsub.f32 %v1477, 1.12e-10
    %v1479 = vmax.f32 %v1478, 0.0
    %v1480 = vrsqrt.pop %v1479
    %v1481 = vmul.f32 %v1479, %v1480
    %vm1482 = vcmp.eq.f32.partialorder %v1479, inf
    %v1483 = vsel %vm1482, %v1479, %v1481
    %vm1484 = vcmp.eq.f32.partialorder %v1479, 0.0
    %v1485 = vand.u32 %v1479, 2147483648
    %v1486 = vsel %vm1484, %v1485, %v1483
    %1487 = vst.msk [vmem:[#allocation8] sm:$0x1] %vm1375, %v1486
    // Predicated region
    $region70: #{tpu_custom_call.1} parent=1 // pred_check
      _
    $region71: #{tpu_custom_call.1} parent=1 // pred_check_branch
      %1489 = sbr.rel (0) target = $region73
    $region72: #{tpu_custom_call.1} parent=1 // pred_region
      %s1491 = ssub.s32 16, 16
      %1492 = vsyncadd [#allocation4], %s1491
      %s1494 = sshll.u32 [#allocation7], 4
      %s1495 = int_to_ptr.vmem [resolvable:$true] %s1494
      %1497 = dma.vmem_to_hbm [thread:$0]  %s1495, 16, %s15, [#allocation4]
    $region73: #{tpu_custom_call.1} parent=1 // pred_fallthru
      _
    // Predicated region
    $region74: #{tpu_custom_call.1} parent=1 // pred_check
      _
    $region75: #{tpu_custom_call.1} parent=1 // pred_check_branch
      %1499 = sbr.rel (0) target = $region77
    $region76: #{tpu_custom_call.1} parent=1 // pred_region
      %s1501 = ssub.s32 16, 16
      %1502 = vsyncadd [#allocation9], %s1501
      %s1504 = sshll.u32 [#allocation8], 4
      %s1505 = int_to_ptr.vmem [resolvable:$true] %s1504
      %1507 = dma.vmem_to_hbm [thread:$0]  %s1505, 16, %s16, [#allocation9]
    $region77: #{tpu_custom_call.1} parent=1 // pred_fallthru
      _
    // Predicated region
    $region78: #{tpu_custom_call.1} parent=1 // pred_check
      _
    $region79: #{tpu_custom_call.1} parent=1 // pred_check_branch
      %1509 = sbr.rel (0) target = $region81
    $region80: #{tpu_custom_call.1} parent=1 // pred_region
      %s1511 = ssub.s32 1024, 1024
      %1512 = vsyncadd [#allocation9], %s1511
      %s1513 = sshll.u32 [#allocation10], 4
      %s1514 = int_to_ptr.vmem [resolvable:$true] %s1513
      %1519 = dma.vmem_to_hbm [thread:$0]  %s1514, 1024, %s17, [#allocation9], 128, 128, 8
    $region81: #{tpu_custom_call.1} parent=1 // pred_fallthru
      _
    // Predicated region
    $region82: #{tpu_custom_call.1} parent=1 // pred_check
      _
    $region83: #{tpu_custom_call.1} parent=1 // pred_check_branch
      %1521 = sbr.rel (0) target = $region85
    $region84: #{tpu_custom_call.1} parent=1 // pred_region
      %s1523 = ssub.s32 1024, 1024
      %1524 = vsyncadd [#allocation12], %s1523
      %s1525 = sshll.u32 [#allocation11], 4
      %s1526 = int_to_ptr.vmem [resolvable:$true] %s1525
      %1531 = dma.vmem_to_hbm [thread:$0]  %s1526, 1024, %s18, [#allocation12], 128, 128, 8
    $region85: #{tpu_custom_call.1} parent=1 // pred_fallthru
      _
    // Predicated region
    $region86: #{tpu_custom_call.1} parent=1 // pred_check
      _
    $region87: #{tpu_custom_call.1} parent=1 // pred_check_branch
      %1533 = sbr.rel (0) target = $region89
    $region88: #{tpu_custom_call.1} parent=1 // pred_region
      %s1535 = ssub.s32 1024, 1024
      %1536 = vsyncadd [#allocation12], %s1535
      %s1537 = sshll.u32 [#allocation13], 4
      %s1538 = int_to_ptr.vmem [resolvable:$true] %s1537
      %1543 = dma.vmem_to_hbm [thread:$0]  %s1538, 1024, %s19, [#allocation12], 128, 128, 8
    $region89: #{tpu_custom_call.1} parent=1 // pred_fallthru
      _
    // Predicated region
    $region90: #{tpu_custom_call.1} parent=1 // pred_check
      _
    $region91: #{tpu_custom_call.1} parent=1 // pred_check_branch
      %1545 = sbr.rel (0) target = $region93
    $region92: #{tpu_custom_call.1} parent=1 // pred_region
      %1546 = dma.done [#allocation4], 16
    $region93: #{tpu_custom_call.1} parent=1 // pred_fallthru
      _
    // Predicated region
    $region94: #{tpu_custom_call.1} parent=1 // pred_check
      _
    $region95: #{tpu_custom_call.1} parent=1 // pred_check_branch
      %1548 = sbr.rel (0) target = $region97
    $region96: #{tpu_custom_call.1} parent=1 // pred_region
      %1549 = dma.done [#allocation9], 16
    $region97: #{tpu_custom_call.1} parent=1 // pred_fallthru
      _
    // Predicated region
    $region98: #{tpu_custom_call.1} parent=1 // pred_check
      _
    $region99: #{tpu_custom_call.1} parent=1 // pred_check_branch
      %1551 = sbr.rel (0) target = $region101
    $region100: #{tpu_custom_call.1} parent=1 // pred_region
      %1552 = dma.done [#allocation9], 1024
    $region101: #{tpu_custom_call.1} parent=1 // pred_fallthru
      _
    // Predicated region
    $region102: #{tpu_custom_call.1} parent=1 // pred_check
      _
    $region103: #{tpu_custom_call.1} parent=1 // pred_check_branch
      %1554 = sbr.rel (0) target = $region105
    $region104: #{tpu_custom_call.1} parent=1 // pred_region
      %1555 = dma.done [#allocation12], 1024
    $region105: #{tpu_custom_call.1} parent=1 // pred_fallthru
      _
    // Predicated region
    $region106: #{tpu_custom_call.1} parent=1 // pred_check
      _
    $region107: #{tpu_custom_call.1} parent=1 // pred_check_branch
      %1557 = sbr.rel (0) target = $region109
    $region108: #{tpu_custom_call.1} parent=1 // pred_region
      %1558 = dma.done [#allocation12], 1024
    $region109: #{tpu_custom_call.1} parent=1 // pred_fallthru
      _
    %1559 = vsyncpa [#allocation3], 1
    %1560 = vsyncpa [#allocation6], 1
    %1561 = vsyncpa [#allocation4], 1
    %1562 = vsyncpa [#allocation9], 1
    %1563 = vsyncpa [#allocation12], 1

</llo_original>
